<compile_context>
chip_gen: v7x
topology: tpu7x:2x2x1
jax: 0.10.0
libtpu: 0.0.40
codegen_flags: <defaults>
</compile_context>

<pallas_src>
import jax
import jax.numpy as jnp
from jax.experimental import pallas as pl
from jax.experimental.pallas import tpu as pltpu


# ---------------------------------------------------------------------------
# Model dimensions (small stand-ins for 768 / 512 / 196 / 30522)
# ---------------------------------------------------------------------------
B = 2        # batch
N = 16       # number of image patch tokens (ViT: 196)
DV = 128     # ViT hidden size stand-in (768)
H = 128      # BERT hidden size stand-in (768)  -- ImageEncoder maps DV -> H
A = 128      # Attention dim_out stand-in (512)
V = 256      # vocab_size
NUM_ATT_LAYERS = 2   # nn.ModuleList([Attention(...)]*2) -> SHARED weights
TILE_V = 128         # vocab tile for the classifier matmul
                     # (scale to ~1024 on v5e, 2048-4096 on v6e, 1024-2048 on v7x)


# ---------------------------------------------------------------------------
# Kernel 1: ImageEncoder.fc  +  2x shared SAN Attention layers  ->  u (B, H)
# ---------------------------------------------------------------------------
def san_kernel(vi_feat_ref, vq_ref,
               w_fc_ref, b_fc_ref,
               w_img_ref, b_img_ref,
               w_q_ref, b_q_ref,
               w_att_ref, b_att_ref,
               u_ref):
    b, n, dv = vi_feat_ref.shape
    h = vq_ref.shape[1]
    a = w_img_ref.shape[1]

    # ---- ImageEncoder.fc : Linear(DV->H) + Dropout(id) + Tanh --------------
    vi_in = vi_feat_ref[...].reshape(b * n, dv).astype(jnp.bfloat16)
    vi2d = jnp.tanh(
        jnp.dot(vi_in, w_fc_ref[...], preferred_element_type=jnp.float32)
        + b_fc_ref[...])                                          # (B*N, H) f32
    vi3 = vi2d.reshape(b, n, h)                                   # (B, N, H)

    # ---- Loop-invariant hoists (SAN weights are shared; `image` doesn't
    #      depend on the question state u) ----------------------------------
    image3 = (jnp.dot(vi2d.astype(jnp.bfloat16), w_img_ref[...],
                      preferred_element_type=jnp.float32)
              + b_img_ref[...]).reshape(b, n, a)                  # (B, N, A)
    w_att_b = w_att_ref[...][None, :, :]                          # (1, 1, A)
    b_att = b_att_ref[0]                                          # SMEM scalar

    u = vq_ref[...]                                               # (B, H) f32
    for _ in range(NUM_ATT_LAYERS):   # same weights each iter (shared module)
        # ques = ff_question(u).unsqueeze(1)
        ques = jnp.dot(u.astype(jnp.bfloat16), w_q_ref[...],
                       preferred_element_type=jnp.float32) + b_q_ref[...]  # (B, A)
        # ha = tanh(image + ques); dropout = identity
        ha = jnp.tanh(image3 + ques[:, None, :])                  # (B, N, A)
        # att = ff_attention(ha)  (Linear(A, 1))
        att = jnp.sum(ha * w_att_b, axis=-1) + b_att              # (B, N)
        # pi = softmax over token dim
        att = att - jnp.max(att, axis=1, keepdims=True)
        e = jnp.exp(att)
        pi = e * pl.reciprocal(jnp.sum(e, axis=1, keepdims=True), approx=True)
        # u = (vi * pi).sum(dim=1) + u
        u = jnp.sum(vi3 * pi[:, :, None], axis=1) + u             # (B, H)

    u_ref[...] = u


# ---------------------------------------------------------------------------
# Kernel 2: classifier MLP  Dropout(id) + Linear(H -> V), tiled over vocab
# ---------------------------------------------------------------------------
def mlp_kernel(u_ref, w_mlp_ref, b_mlp_ref, out_ref):
    out_ref[...] = (jnp.dot(u_ref[...].astype(jnp.bfloat16), w_mlp_ref[...],
                            preferred_element_type=jnp.float32)
                    + b_mlp_ref[...])


# ---------------------------------------------------------------------------
# Parameters (bf16 matmul weights, f32 biases / attention vector)
# ---------------------------------------------------------------------------
def make_params(key):
    ks = jax.random.split(key, 6)
    s = 0.05
    return dict(
        w_fc=(s * jax.random.normal(ks[0], (DV, H), jnp.float32)).astype(jnp.bfloat16),
        b_fc=jnp.zeros((1, H), jnp.float32),
        w_img=(s * jax.random.normal(ks[1], (H, A), jnp.float32)).astype(jnp.bfloat16),
        b_img=jnp.zeros((1, A), jnp.float32),
        w_q=(s * jax.random.normal(ks[2], (H, A), jnp.float32)).astype(jnp.bfloat16),
        b_q=jnp.zeros((1, A), jnp.float32),
        w_att=s * jax.random.normal(ks[3], (1, A), jnp.float32),
        b_att=jnp.zeros((1,), jnp.float32),
        w_mlp=(s * jax.random.normal(ks[4], (H, V), jnp.float32)).astype(jnp.bfloat16),
        b_mlp=jnp.zeros((1, V), jnp.float32),
    )


@jax.jit
def vqa_forward(vi_feat, vq, params):
    vmem = pl.BlockSpec(memory_space=pltpu.MemorySpace.VMEM)
    smem = pl.BlockSpec(memory_space=pltpu.MemorySpace.SMEM)

    # ---- SAN head (small weights, single block) ----------------------------
    san_args = (vi_feat, vq,
                params["w_fc"], params["b_fc"],
                params["w_img"], params["b_img"],
                params["w_q"], params["b_q"],
                params["w_att"], params["b_att"])
    u = pl.pallas_call(
        san_kernel,
        out_shape=jax.ShapeDtypeStruct((B, H), jnp.float32),
        in_specs=[vmem] * 9 + [smem],   # b_att scalar lives in SMEM
        out_specs=vmem,
    )(*san_args)

    # ---- Classifier matmul, gridded & pipelined over the vocab dimension ---
    out = pl.pallas_call(
        mlp_kernel,
        out_shape=jax.ShapeDtypeStruct((B, V), jnp.float32),
        grid_spec=pltpu.PrefetchScalarGridSpec(
            num_scalar_prefetch=0,
            grid=(V // TILE_V,),
            in_specs=[
                pl.BlockSpec((B, H), lambda j: (0, 0)),        # u (resident)
                pl.BlockSpec((H, TILE_V), lambda j: (0, j)),   # w_mlp tile
                pl.BlockSpec((1, TILE_V), lambda j: (0, j)),   # b_mlp tile
            ],
            out_specs=pl.BlockSpec((B, TILE_V), lambda j: (0, j)),
        ),
        compiler_params=pltpu.CompilerParams(
            dimension_semantics=("parallel",)),   # v7x: split vocab tiles over 2 TCs
    )(u, params["w_mlp"], params["b_mlp"])
    return out


# ---------------------------------------------------------------------------
# Pure-JAX reference (same bf16 matmul casting) for correctness check
# ---------------------------------------------------------------------------
def vqa_reference(vi_feat, vq, p):
    bf = jnp.bfloat16
    vi = jnp.tanh(
        jnp.dot(vi_feat.astype(bf).reshape(B * N, DV), p["w_fc"],
                preferred_element_type=jnp.float32).reshape(B, N, H)
        + p["b_fc"])
    image = (jnp.dot(vi.reshape(B * N, H).astype(bf), p["w_img"],
                     preferred_element_type=jnp.float32).reshape(B, N, A)
             + p["b_img"])
    u = vq
    for _ in range(NUM_ATT_LAYERS):
        ques = jnp.dot(u.astype(bf), p["w_q"],
                       preferred_element_type=jnp.float32) + p["b_q"]
        ha = jnp.tanh(image + ques[:, None, :])
        att = jnp.sum(ha * p["w_att"][None, :, :], axis=-1) + p["b_att"][0]
        pi = jax.nn.softmax(att, axis=1)
        u = jnp.sum(vi * pi[:, :, None], axis=1) + u
    return jnp.dot(u.astype(bf), p["w_mlp"],
                   preferred_element_type=jnp.float32) + p["b_mlp"]


if __name__ == "__main__":
    key = jax.random.PRNGKey(0)
    k_feat, k_vq, k_params = jax.random.split(key, 3)

    # Synthetic backbone outputs (stand-ins for ViT patch features & BERT pooler)
    vi_feat = jax.random.normal(k_feat, (B, N, DV), jnp.float32)
    vq = jax.random.normal(k_vq, (B, H), jnp.float32)
    params = make_params(k_params)

    out = jax.block_until_ready(vqa_forward(vi_feat, vq, params))

    ref = vqa_reference(vi_feat, vq, params)
    assert out.shape == (B, V)
    # bf16 matmuls + approx reciprocal -> loosened tolerance vs. the f32 original
    assert jnp.allclose(out, ref, atol=1e-2, rtol=1e-2), "mismatch vs JAX reference"

    print("KERNEL_OK")
</pallas_src>

<mosaic_0001>
module attributes {stable_mosaic.version = 11 : i64} {
  func.func @mlp_kernel(%arg0: i32, %arg1: memref<2x128xf32, #tpu.memory_space<vmem>>, %arg2: memref<128x128xbf16, #tpu.memory_space<vmem>>, %arg3: memref<1x128xf32, #tpu.memory_space<vmem>>, %arg4: memref<2x128xf32, #tpu.memory_space<vmem>>) attributes {dimension_semantics = [#tpu.dimension_semantics<parallel>], iteration_bounds = array<i64: 2>, scalar_prefetch = 0 : i64, scratch_operands = 0 : i64, tpu.core_type = #tpu.core_type<tc>, window_params = [{pipeline_mode = #tpu.pipeline_mode<synchronous>, transform_indices = @transform_0, window_bounds = array<i64: 2, 128>}, {transform_indices = @transform_1, window_bounds = array<i64: 128, 128>}, {transform_indices = @transform_2, window_bounds = array<i64: 1, 128>}, {transform_indices = @transform_3, window_bounds = array<i64: 2, 128>}]} {
    %c0 = arith.constant 0 : index
    %c0_0 = arith.constant 0 : index
    %0 = vector.load %arg1[%c0, %c0_0] : memref<2x128xf32, #tpu.memory_space<vmem>>, vector<2x128xf32>
    %1 = arith.truncf %0 : vector<2x128xf32> to vector<2x128xbf16>
    %c0_1 = arith.constant 0 : index
    %c0_2 = arith.constant 0 : index
    %2 = vector.load %arg2[%c0_1, %c0_2] : memref<128x128xbf16, #tpu.memory_space<vmem>>, vector<128x128xbf16>
    %cst = arith.constant dense<0.000000e+00> : vector<2x128xf32>
    %3 = tpu.matmul %1, %2, %cst {dimension_numbers = #tpu.dot_dimension_numbers<[1], [0], [0], [1], [0, 0, 1, 1], [], []>} : vector<2x128xbf16>, vector<128x128xbf16>, vector<2x128xf32> -> vector<2x128xf32>
    %c0_3 = arith.constant 0 : index
    %c0_4 = arith.constant 0 : index
    %4 = vector.load %arg3[%c0_3, %c0_4] : memref<1x128xf32, #tpu.memory_space<vmem>>, vector<1x128xf32>
    %5 = vector.broadcast %4 : vector<1x128xf32> to vector<2x128xf32>
    %6 = arith.addf %3, %5 : vector<2x128xf32>
    %c0_5 = arith.constant 0 : index
    %c0_6 = arith.constant 0 : index
    %7 = vector.load %arg4[%c0_5, %c0_6] : memref<2x128xf32, #tpu.memory_space<vmem>>, vector<2x128xf32>
    tpu.vector_store %arg4[%c0_5, %c0_6], %6 {strides = array<i32>} : memref<2x128xf32, #tpu.memory_space<vmem>>, vector<2x128xf32>,
    return
  }
  func.func @transform_0(%arg0: i32) -> (i32, i32) {
    %c0_i32 = arith.constant 0 : i32
    %c0_i32_0 = arith.constant 0 : i32
    %c0_i32_1 = arith.constant 0 : i32
    return %c0_i32, %c0_i32_0 : i32, i32
  }
  func.func @transform_1(%arg0: i32) -> (i32, i32) {
    %c0_i32 = arith.constant 0 : i32
    %c0_i32_0 = arith.constant 0 : i32
    return %c0_i32, %arg0 : i32, i32
  }
  func.func @transform_2(%arg0: i32) -> (i32, i32) {
    %c0_i32 = arith.constant 0 : i32
    %c0_i32_0 = arith.constant 0 : i32
    return %c0_i32, %arg0 : i32, i32
  }
  func.func @transform_3(%arg0: i32) -> (i32, i32) {
    %c0_i32 = arith.constant 0 : i32
    %c0_i32_0 = arith.constant 0 : i32
    return %c0_i32, %arg0 : i32, i32
  }
}

module attributes {stable_mosaic.version = 11 : i64} {
  func.func @san_kernel(%arg0: memref<2x16x128xf32, #tpu.memory_space<vmem>>, %arg1: memref<2x128xf32, #tpu.memory_space<vmem>>, %arg2: memref<128x128xbf16, #tpu.memory_space<vmem>>, %arg3: memref<1x128xf32, #tpu.memory_space<vmem>>, %arg4: memref<128x128xbf16, #tpu.memory_space<vmem>>, %arg5: memref<1x128xf32, #tpu.memory_space<vmem>>, %arg6: memref<128x128xbf16, #tpu.memory_space<vmem>>, %arg7: memref<1x128xf32, #tpu.memory_space<vmem>>, %arg8: memref<1x128xf32, #tpu.memory_space<vmem>>, %arg9: memref<1xf32, #tpu.memory_space<smem>>, %arg10: memref<2x128xf32, #tpu.memory_space<vmem>>) attributes {dimension_semantics = [], scalar_prefetch = 0 : i64, scratch_operands = 0 : i64, tpu.core_type = #tpu.core_type<tc>} {
    %c0 = arith.constant 0 : index
    %c0_0 = arith.constant 0 : index
    %c0_1 = arith.constant 0 : index
    %0 = vector.load %arg0[%c0, %c0_0, %c0_1] : memref<2x16x128xf32, #tpu.memory_space<vmem>>, vector<2x16x128xf32>
    %1 = vector.shape_cast %0 : vector<2x16x128xf32> to vector<32x128xf32>
    %2 = arith.truncf %1 : vector<32x128xf32> to vector<32x128xbf16>
    %c0_2 = arith.constant 0 : index
    %c0_3 = arith.constant 0 : index
    %3 = vector.load %arg2[%c0_2, %c0_3] : memref<128x128xbf16, #tpu.memory_space<vmem>>, vector<128x128xbf16>
    %cst = arith.constant dense<0.000000e+00> : vector<32x128xf32>
    %4 = tpu.matmul %2, %3, %cst {dimension_numbers = #tpu.dot_dimension_numbers<[1], [0], [0], [1], [0, 0, 1, 1], [], []>} : vector<32x128xbf16>, vector<128x128xbf16>, vector<32x128xf32> -> vector<32x128xf32>
    %c0_4 = arith.constant 0 : index
    %c0_5 = arith.constant 0 : index
    %5 = vector.load %arg3[%c0_4, %c0_5] : memref<1x128xf32, #tpu.memory_space<vmem>>, vector<1x128xf32>
    %6 = vector.broadcast %5 : vector<1x128xf32> to vector<32x128xf32>
    %7 = arith.addf %4, %6 : vector<32x128xf32>
    %8 = math.tanh %7 : vector<32x128xf32>
    %9 = vector.shape_cast %8 : vector<32x128xf32> to vector<2x16x128xf32>
    %10 = arith.truncf %8 : vector<32x128xf32> to vector<32x128xbf16>
    %c0_6 = arith.constant 0 : index
    %c0_7 = arith.constant 0 : index
    %11 = vector.load %arg4[%c0_6, %c0_7] : memref<128x128xbf16, #tpu.memory_space<vmem>>, vector<128x128xbf16>
    %cst_8 = arith.constant dense<0.000000e+00> : vector<32x128xf32>
    %12 = tpu.matmul %10, %11, %cst_8 {dimension_numbers = #tpu.dot_dimension_numbers<[1], [0], [0], [1], [0, 0, 1, 1], [], []>} : vector<32x128xbf16>, vector<128x128xbf16>, vector<32x128xf32> -> vector<32x128xf32>
    %c0_9 = arith.constant 0 : index
    %c0_10 = arith.constant 0 : index
    %13 = vector.load %arg5[%c0_9, %c0_10] : memref<1x128xf32, #tpu.memory_space<vmem>>, vector<1x128xf32>
    %14 = vector.broadcast %13 : vector<1x128xf32> to vector<32x128xf32>
    %15 = arith.addf %12, %14 : vector<32x128xf32>
    %16 = vector.shape_cast %15 : vector<32x128xf32> to vector<2x16x128xf32>
    %c0_11 = arith.constant 0 : index
    %c0_12 = arith.constant 0 : index
    %17 = vector.load %arg8[%c0_11, %c0_12] : memref<1x128xf32, #tpu.memory_space<vmem>>, vector<1x128xf32>
    %18 = vector.shape_cast %17 : vector<1x128xf32> to vector<1x1x128xf32>
    %c0_13 = arith.constant 0 : index
    %19 = memref.load %arg9[%c0_13] : memref<1xf32, #tpu.memory_space<smem>>
    %c0_14 = arith.constant 0 : index
    %c0_15 = arith.constant 0 : index
    %20 = vector.load %arg1[%c0_14, %c0_15] : memref<2x128xf32, #tpu.memory_space<vmem>>, vector<2x128xf32>
    %21 = arith.truncf %20 : vector<2x128xf32> to vector<2x128xbf16>
    %c0_16 = arith.constant 0 : index
    %c0_17 = arith.constant 0 : index
    %22 = vector.load %arg6[%c0_16, %c0_17] : memref<128x128xbf16, #tpu.memory_space<vmem>>, vector<128x128xbf16>
    %cst_18 = arith.constant dense<0.000000e+00> : vector<2x128xf32>
    %23 = tpu.matmul %21, %22, %cst_18 {dimension_numbers = #tpu.dot_dimension_numbers<[1], [0], [0], [1], [0, 0, 1, 1], [], []>} : vector<2x128xbf16>, vector<128x128xbf16>, vector<2x128xf32> -> vector<2x128xf32>
    %c0_19 = arith.constant 0 : index
    %c0_20 = arith.constant 0 : index
    %24 = vector.load %arg7[%c0_19, %c0_20] : memref<1x128xf32, #tpu.memory_space<vmem>>, vector<1x128xf32>
    %25 = vector.broadcast %24 : vector<1x128xf32> to vector<2x128xf32>
    %26 = arith.addf %23, %25 : vector<2x128xf32>
    %27 = vector.shape_cast %26 : vector<2x128xf32> to vector<2x1x128xf32>
    %28 = vector.broadcast %27 : vector<2x1x128xf32> to vector<2x16x128xf32>
    %29 = arith.addf %16, %28 : vector<2x16x128xf32>
    %30 = math.tanh %29 : vector<2x16x128xf32>
    %31 = vector.broadcast %18 : vector<1x1x128xf32> to vector<2x16x128xf32>
    %32 = arith.mulf %30, %31 : vector<2x16x128xf32>
    %cst_21 = arith.constant dense<0.000000e+00> : vector<2x16xf32>
    %33 = vector.multi_reduction <add>, %32, %cst_21 [2] : vector<2x16x128xf32> to vector<2x16xf32>
    %34 = vector.broadcast %19 : f32 to vector<2x16xf32>
    %35 = arith.addf %33, %34 : vector<2x16xf32>
    %cst_22 = arith.constant dense<0xFF800000> : vector<2xf32>
    %36 = vector.multi_reduction <maximumf>, %35, %cst_22 [1] : vector<2x16xf32> to vector<2xf32>
    %37 = vector.shape_cast %36 : vector<2xf32> to vector<2x1xf32>
    %38 = vector.broadcast %37 : vector<2x1xf32> to vector<2x16xf32>
    %39 = arith.subf %35, %38 : vector<2x16xf32>
    %40 = math.exp %39 : vector<2x16xf32>
    %cst_23 = arith.constant dense<0.000000e+00> : vector<2xf32>
    %41 = vector.multi_reduction <add>, %40, %cst_23 [1] : vector<2x16xf32> to vector<2xf32>
    %42 = vector.shape_cast %41 : vector<2xf32> to vector<2x1xf32>
    %43 = tpu.reciprocal %42 {approx = true} : vector<2x1xf32> -> vector<2x1xf32>
    %44 = vector.broadcast %43 : vector<2x1xf32> to vector<2x16xf32>
    %45 = arith.mulf %40, %44 : vector<2x16xf32>
    %46 = vector.shape_cast %45 : vector<2x16xf32> to vector<2x16x1xf32>
    %47 = vector.broadcast %46 : vector<2x16x1xf32> to vector<2x16x128xf32>
    %48 = arith.mulf %9, %47 : vector<2x16x128xf32>
    %cst_24 = arith.constant dense<0.000000e+00> : vector<2x128xf32>
    %49 = vector.multi_reduction <add>, %48, %cst_24 [1] : vector<2x16x128xf32> to vector<2x128xf32>
    %50 = arith.addf %49, %20 : vector<2x128xf32>
    %51 = arith.truncf %50 : vector<2x128xf32> to vector<2x128xbf16>
    %c0_25 = arith.constant 0 : index
    %c0_26 = arith.constant 0 : index
    %52 = vector.load %arg6[%c0_25, %c0_26] : memref<128x128xbf16, #tpu.memory_space<vmem>>, vector<128x128xbf16>
    %cst_27 = arith.constant dense<0.000000e+00> : vector<2x128xf32>
    %53 = tpu.matmul %51, %52, %cst_27 {dimension_numbers = #tpu.dot_dimension_numbers<[1], [0], [0], [1], [0, 0, 1, 1], [], []>} : vector<2x128xbf16>, vector<128x128xbf16>, vector<2x128xf32> -> vector<2x128xf32>
    %c0_28 = arith.constant 0 : index
    %c0_29 = arith.constant 0 : index
    %54 = vector.load %arg7[%c0_28, %c0_29] : memref<1x128xf32, #tpu.memory_space<vmem>>, vector<1x128xf32>
    %55 = vector.broadcast %54 : vector<1x128xf32> to vector<2x128xf32>
    %56 = arith.addf %53, %55 : vector<2x128xf32>
    %57 = vector.shape_cast %56 : vector<2x128xf32> to vector<2x1x128xf32>
    %58 = vector.broadcast %57 : vector<2x1x128xf32> to vector<2x16x128xf32>
    %59 = arith.addf %16, %58 : vector<2x16x128xf32>
    %60 = math.tanh %59 : vector<2x16x128xf32>
    %61 = vector.broadcast %18 : vector<1x1x128xf32> to vector<2x16x128xf32>
    %62 = arith.mulf %60, %61 : vector<2x16x128xf32>
    %cst_30 = arith.constant dense<0.000000e+00> : vector<2x16xf32>
    %63 = vector.multi_reduction <add>, %62, %cst_30 [2] : vector<2x16x128xf32> to vector<2x16xf32>
    %64 = vector.broadcast %19 : f32 to vector<2x16xf32>
    %65 = arith.addf %63, %64 : vector<2x16xf32>
    %cst_31 = arith.constant dense<0xFF800000> : vector<2xf32>
    %66 = vector.multi_reduction <maximumf>, %65, %cst_31 [1] : vector<2x16xf32> to vector<2xf32>
    %67 = vector.shape_cast %66 : vector<2xf32> to vector<2x1xf32>
    %68 = vector.broadcast %67 : vector<2x1xf32> to vector<2x16xf32>
    %69 = arith.subf %65, %68 : vector<2x16xf32>
    %70 = math.exp %69 : vector<2x16xf32>
    %cst_32 = arith.constant dense<0.000000e+00> : vector<2xf32>
    %71 = vector.multi_reduction <add>, %70, %cst_32 [1] : vector<2x16xf32> to vector<2xf32>
    %72 = vector.shape_cast %71 : vector<2xf32> to vector<2x1xf32>
    %73 = tpu.reciprocal %72 {approx = true} : vector<2x1xf32> -> vector<2x1xf32>
    %74 = vector.broadcast %73 : vector<2x1xf32> to vector<2x16xf32>
    %75 = arith.mulf %70, %74 : vector<2x16xf32>
    %76 = vector.shape_cast %75 : vector<2x16xf32> to vector<2x16x1xf32>
    %77 = vector.broadcast %76 : vector<2x16x1xf32> to vector<2x16x128xf32>
    %78 = arith.mulf %9, %77 : vector<2x16x128xf32>
    %cst_33 = arith.constant dense<0.000000e+00> : vector<2x128xf32>
    %79 = vector.multi_reduction <add>, %78, %cst_33 [1] : vector<2x16x128xf32> to vector<2x128xf32>
    %80 = arith.addf %79, %50 : vector<2x128xf32>
    %c0_34 = arith.constant 0 : index
    %c0_35 = arith.constant 0 : index
    %81 = vector.load %arg10[%c0_34, %c0_35] : memref<2x128xf32, #tpu.memory_space<vmem>>, vector<2x128xf32>
    tpu.vector_store %arg10[%c0_34, %c0_35], %80 {strides = array<i32>} : memref<2x128xf32, #tpu.memory_space<vmem>>, vector<2x128xf32>,
    return
  }
}

</mosaic_0001>

<llo_original>
// kernel: vqa_forward.3
$region0: #{vqa_forward.3}
  #allocation0 [shape = 'u32[]', space=smem, size = 0x4, offset = 0x4, fixed_abs, tag = 'smem constant byte address 0x4 - core index']
  #allocation1 [shape = 'u32[144,128]{1,0:T(1,128)}', space=vmem, size = 0x12000, scoped, tag = 'internal scratch']
  %s0 = inlined_call_operand.vmem [shape: f32[2,128], index: 0, kind: input, shape index: {}]
  %s1 = inlined_call_operand.vmem [shape: bf16[128,256], index: 1, kind: input, shape index: {}]
  %s2 = inlined_call_operand.vmem [shape: f32[1,256], index: 2, kind: input, shape index: {}]
  %s3 = inlined_call_operand.hbm [shape: f32[2,256], index: 3, kind: output, shape index: {}]
  %s4 = sld [smem:[#allocation0]]
  $region86: #{vqa_forward.3} parent=0
    _
  %s6 = ssub.s32 1, %s4
  %s7 = scalar_select 0, %s6, %s4
  $region1: #{vqa_forward.3} parent=0
    #allocation2 [shape = 'u8[65536]{0}', space=vmem, size = 0x10000, scoped, tag = 'input window, operand 1']
    #allocation3 [shape = 'u8[2048]{0}', space=vmem, size = 0x800, scoped, tag = 'output window, operand 0']
    #allocation4 [shape = 's32[2]{0}', space=sflag, size = 0x8, scoped, tag = 'scoped memory for vqa_forward.3']
    %8 = vsyncpa [#allocation4], 0
    %s9 = scalar_lea.sflag [#allocation4], 1
    %10 = vsyncpa %s9, 0
    loop: start=0, step=1, limit=4
    $region2: #{vqa_forward.3} parent=1 // loop_pre_header
      _
    $region3: #{vqa_forward.3} parent=1 // loop_header
      %s12 = sphi 0, %s16
      %p13 = scmp.ge.s32.totalorder %s12, 4
      %s20 = sphi 0, %s20
      %s22 = sphi 0, %s20
      %s23 = sphi 0, %s22
      %s37 = sphi 0, %s23
      %s43 = sphi 0, %s45
      %s46 = sphi 0, %s43
      %s47 = sphi 0, %s46
      %s63 = sphi 0, %s47
      %s69 = sphi 0, %s71
      %s72 = sphi 0, %s69
      %s73 = sphi 0, %s72
      %s89 = sphi 0, %s73
      %s95 = sphi 0, %s97
      %s98 = sphi 0, %s95
      %s99 = sphi 0, %s98
      %s115 = sphi 0, %s99
    $region4: #{vqa_forward.3} parent=1 // loop_header_branch
      %15 = sbr.rel (%p13) target = $region8
    $region5: #{vqa_forward.3} parent=1 // loop_body
      %s17 = ssub.s32 %s12, 1
      %s18 = ssub.s32 %s12, 2
      %s19 = sadd.s32 %s12, 1
      %s21 = sadd.s32 %s20, 1
      %p24 = scmp.eq.s32.totalorder %s12, 1
      %p25 = scmp.ne.s32.totalorder %s20, %s22
      %p26 = scmp.eq.s32.totalorder %s12, 0
      %p27 = por %p25, %p26
      %p28 = scmp.ne.s32.totalorder %s20, %s22
      %p29 = scmp.eq.s32.totalorder %s17, 1
      %p30 = por %p28, %p29
      %p31 = scmp.ne.s32.totalorder %s22, %s23
      %p32 = scmp.eq.s32.totalorder %s17, 0
      %p33 = por %p31, %p32
      %p34 = scmp.ne.s32.totalorder %s22, %s23
      %p35 = scmp.eq.s32.totalorder %s18, 1
      %p36 = por %p34, %p35
      %p38 = scmp.ne.s32.totalorder %s23, %s37
      %p39 = scmp.eq.s32.totalorder %s18, 0
      %p40 = por %p38, %p39
      %s41 = ssub.s32 %s12, %s19
      %p42 = scmp.eq.s32.totalorder %s41, 0
      %s44 = sadd.s32 %s43, 1
      %s45 = scalar_select %p42, %s43, %s44
      %p48 = pneg %p42
      %p49 = scmp.eq.s32.totalorder %s12, 1
      %p50 = por %p48, %p49
      %p51 = scmp.ne.s32.totalorder %s43, %s46
      %p52 = scmp.eq.s32.totalorder %s12, 0
      %p53 = por %p51, %p52
      %p54 = scmp.ne.s32.totalorder %s43, %s46
      %p55 = scmp.eq.s32.totalorder %s17, 1
      %p56 = por %p54, %p55
      %p57 = scmp.ne.s32.totalorder %s46, %s47
      %p58 = scmp.eq.s32.totalorder %s17, 0
      %p59 = por %p57, %p58
      %p60 = scmp.ne.s32.totalorder %s46, %s47
      %p61 = scmp.eq.s32.totalorder %s18, 1
      %p62 = por %p60, %p61
      %p64 = scmp.ne.s32.totalorder %s47, %s63
      %p65 = scmp.eq.s32.totalorder %s18, 0
      %p66 = por %p64, %p65
      %s67 = ssub.s32 %s12, %s19
      %p68 = scmp.eq.s32.totalorder %s67, 0
      %s70 = sadd.s32 %s69, 1
      %s71 = scalar_select %p68, %s69, %s70
      %p74 = pneg %p68
      %p75 = scmp.eq.s32.totalorder %s12, 1
      %p76 = por %p74, %p75
      %p77 = scmp.ne.s32.totalorder %s69, %s72
      %p78 = scmp.eq.s32.totalorder %s12, 0
      %p79 = por %p77, %p78
      %p80 = scmp.ne.s32.totalorder %s69, %s72
      %p81 = scmp.eq.s32.totalorder %s17, 1
      %p82 = por %p80, %p81
      %p83 = scmp.ne.s32.totalorder %s72, %s73
      %p84 = scmp.eq.s32.totalorder %s17, 0
      %p85 = por %p83, %p84
      %p86 = scmp.ne.s32.totalorder %s72, %s73
      %p87 = scmp.eq.s32.totalorder %s18, 1
      %p88 = por %p86, %p87
      %p90 = scmp.ne.s32.totalorder %s73, %s89
      %p91 = scmp.eq.s32.totalorder %s18, 0
      %p92 = por %p90, %p91
      %s93 = ssub.s32 %s12, %s19
      %p94 = scmp.eq.s32.totalorder %s93, 0
      %s96 = sadd.s32 %s95, 1
      %s97 = scalar_select %p94, %s95, %s96
      %p100 = pneg %p94
      %p101 = scmp.eq.s32.totalorder %s12, 1
      %p102 = por %p100, %p101
      %p103 = scmp.ne.s32.totalorder %s95, %s98
      %p104 = scmp.eq.s32.totalorder %s12, 0
      %p105 = por %p103, %p104
      %p106 = scmp.ne.s32.totalorder %s95, %s98
      %p107 = scmp.eq.s32.totalorder %s17, 1
      %p108 = por %p106, %p107
      %p109 = scmp.ne.s32.totalorder %s98, %s99
      %p110 = scmp.eq.s32.totalorder %s17, 0
      %p111 = por %p109, %p110
      %p112 = scmp.ne.s32.totalorder %s98, %s99
      %p113 = scmp.eq.s32.totalorder %s18, 1
      %p114 = por %p112, %p113
      %p116 = scmp.ne.s32.totalorder %s99, %s115
      %p117 = scmp.eq.s32.totalorder %s18, 0
      %p118 = por %p116, %p117
      %p119 = scmp.le.s32.totalorder 1, %s12
      %p120 = scmp.lt.s32.totalorder %s12, 3
      %p121 = pnand %p119, %p120
      %p122 = pneg %p121
      // Predicated region
      $region9: #{vqa_forward.3} parent=5 // pred_check
        _
      $region10: #{vqa_forward.3} parent=5 // pred_check_branch
        %124 = sbr.rel (%p121) target = $region12
      $region11: #{vqa_forward.3} parent=5 // pred_region
        %s125 = ssub.s32 %s12, 1
        // Predicated region
        $region13: #{vqa_forward.3} parent=11 // pred_check
          %p126 = pneg %p33
        $region14: #{vqa_forward.3} parent=11 // pred_check_branch
          %128 = sbr.rel (%p126) target = $region16
        $region15: #{vqa_forward.3} parent=11 // pred_region
          _
        $region16: #{vqa_forward.3} parent=11 // pred_fallthru
          _
      $region12: #{vqa_forward.3} parent=5 // pred_fallthru
        _
      %p129 = scmp.lt.s32.totalorder %s12, 2
      // Predicated region
      $region17: #{vqa_forward.3} parent=5 // pred_check
        %p130 = pneg %p129
      $region18: #{vqa_forward.3} parent=5 // pred_check_branch
        %132 = sbr.rel (%p130) target = $region20
      $region19: #{vqa_forward.3} parent=5 // pred_region
        // Predicated region
        $region21: #{vqa_forward.3} parent=19 // pred_check
          %p133 = pneg %p53
        $region22: #{vqa_forward.3} parent=19 // pred_check_branch
          %135 = sbr.rel (%p133) target = $region24
        $region23: #{vqa_forward.3} parent=19 // pred_region
          %s136 = sand.u32 %s43, 1
          %s137 = sand.u32 %s43, 1
          %s138 = smul.addr %s137, 64
          %s139 = scalar_lea.vmem [#allocation2], %s138
          %s140 = smul.addr %s12, 4
          %s141 = scalar_lea.vmem %s1, %s140
          // Predicated region
          $region25: #{vqa_forward.3} parent=23 // pred_check
            _
          $region26: #{vqa_forward.3} parent=23 // pred_check_branch
            %143 = sbr.rel (0) target = $region28
          $region27: #{vqa_forward.3} parent=23 // pred_region
            // Predicated region
            $region29: #{vqa_forward.3} parent=27 // pred_check
              _
            $region30: #{vqa_forward.3} parent=27 // pred_check_branch
              %145 = sbr.rel target = $region32
            $region31: #{vqa_forward.3} parent=27 // pred_region
              // Predicated region
              $region44: #{vqa_forward.3} parent=31 // pred_check
                _
              $region45: #{vqa_forward.3} parent=31 // pred_check_branch
                %190 = sbr.rel (0) target = $region47
              $region46: #{vqa_forward.3} parent=31 // pred_region
                loop: start=0, step=1, limit=1
                $region48: #{vqa_forward.3} parent=46 // loop_pre_header
                  _
                $region49: #{vqa_forward.3} parent=46 // loop_header
                  %s192 = sphi 0, %s196
                  %p193 = scmp.ge.s32.totalorder %s192, 1
                  %s197 = sphi %s141, %s141
                  %s198 = sphi %s139, %s139
                $region50: #{vqa_forward.3} parent=46 // loop_header_branch
                  %195 = sbr.rel (%p193) target = $region54
                $region51: #{vqa_forward.3} parent=46 // loop_body
                  _
                $region52: #{vqa_forward.3} parent=46 // loop_footer
                  %s196 = sadd.s32 1, %s192
                $region53: #{vqa_forward.3} parent=46 // loop_footer_branch
                  %191 = sbr.rel target = $region49
                $region54: #{vqa_forward.3} parent=46 // loop_exit
                  _
                loop: start=0, step=1, limit=1
                $region55: #{vqa_forward.3} parent=46 // loop_pre_header
                  _
                $region56: #{vqa_forward.3} parent=46 // loop_header
                  %s201 = sphi 0, %s205
                  %p202 = scmp.ge.s32.totalorder %s201, 1
                  %s206 = sphi %s141, %s141
                  %s207 = sphi %s139, %s139
                $region57: #{vqa_forward.3} parent=46 // loop_header_branch
                  %204 = sbr.rel (%p202) target = $region61
                $region58: #{vqa_forward.3} parent=46 // loop_body
                  %v208 = vld [vmem:[%s206] sm:$0xf]
                  %209 = vst [vmem:[%s207] sm:$0xf] %v208
                  %v210 = vld [vmem:[%s206 + $0x8] sm:$0xf]
                  %211 = vst [vmem:[%s207 + $0x4] sm:$0xf] %v210
                  %v212 = vld [vmem:[%s206 + $0x10] sm:$0xf]
                  %213 = vst [vmem:[%s207 + $0x8] sm:$0xf] %v212
                  %v214 = vld [vmem:[%s206 + $0x18] sm:$0xf]
                  %215 = vst [vmem:[%s207 + $0xc] sm:$0xf] %v214
                  %v216 = vld [vmem:[%s206 + $0x20] sm:$0xf]
                  %217 = vst [vmem:[%s207 + $0x10] sm:$0xf] %v216
                  %v218 = vld [vmem:[%s206 + $0x28] sm:$0xf]
                  %219 = vst [vmem:[%s207 + $0x14] sm:$0xf] %v218
                  %v220 = vld [vmem:[%s206 + $0x30] sm:$0xf]
                  %221 = vst [vmem:[%s207 + $0x18] sm:$0xf] %v220
                  %v222 = vld [vmem:[%s206 + $0x38] sm:$0xf]
                  %223 = vst [vmem:[%s207 + $0x1c] sm:$0xf] %v222
                  %v224 = vld [vmem:[%s206 + $0x40] sm:$0xf]
                  %225 = vst [vmem:[%s207 + $0x20] sm:$0xf] %v224
                  %v226 = vld [vmem:[%s206 + $0x48] sm:$0xf]
                  %227 = vst [vmem:[%s207 + $0x24] sm:$0xf] %v226
                  %v228 = vld [vmem:[%s206 + $0x50] sm:$0xf]
                  %229 = vst [vmem:[%s207 + $0x28] sm:$0xf] %v228
                  %v230 = vld [vmem:[%s206 + $0x58] sm:$0xf]
                  %231 = vst [vmem:[%s207 + $0x2c] sm:$0xf] %v230
                  %v232 = vld [vmem:[%s206 + $0x60] sm:$0xf]
                  %233 = vst [vmem:[%s207 + $0x30] sm:$0xf] %v232
                  %v234 = vld [vmem:[%s206 + $0x68] sm:$0xf]
                  %235 = vst [vmem:[%s207 + $0x34] sm:$0xf] %v234
                  %v236 = vld [vmem:[%s206 + $0x70] sm:$0xf]
                  %237 = vst [vmem:[%s207 + $0x38] sm:$0xf] %v236
                  %v238 = vld [vmem:[%s206 + $0x78] sm:$0xf]
                  %239 = vst [vmem:[%s207 + $0x3c] sm:$0xf] %v238
                $region59: #{vqa_forward.3} parent=46 // loop_footer
                  %s205 = sadd.s32 1, %s201
                $region60: #{vqa_forward.3} parent=46 // loop_footer_branch
                  %200 = sbr.rel target = $region56
                $region61: #{vqa_forward.3} parent=46 // loop_exit
                  _
              $region47: #{vqa_forward.3} parent=31 // pred_fallthru
                _
            $region32: #{vqa_forward.3} parent=27 // pred_fallthru
              _
            // Predicated region
            $region33: #{vqa_forward.3} parent=27 // pred_check
              _
            $region34: #{vqa_forward.3} parent=27 // pred_check_branch
              %147 = sbr.rel (0) target = $region36
            $region35: #{vqa_forward.3} parent=27 // pred_region
              loop: start=0, step=1, limit=1
              $region37: #{vqa_forward.3} parent=35 // loop_pre_header
                _
              $region38: #{vqa_forward.3} parent=35 // loop_header
                %s150 = sphi 0, %s154
                %p151 = scmp.ge.s32.totalorder %s150, 1
                %s155 = sphi %s141, %s141
                %s156 = sphi %s139, %s139
              $region39: #{vqa_forward.3} parent=35 // loop_header_branch
                %153 = sbr.rel (%p151) target = $region43
              $region40: #{vqa_forward.3} parent=35 // loop_body
                %v157 = vld [vmem:[%s155] sm:$0xf]
                %158 = vst [vmem:[%s156] sm:$0xf] %v157
                %v159 = vld [vmem:[%s155 + $0x8] sm:$0xf]
                %160 = vst [vmem:[%s156 + $0x4] sm:$0xf] %v159
                %v161 = vld [vmem:[%s155 + $0x10] sm:$0xf]
                %162 = vst [vmem:[%s156 + $0x8] sm:$0xf] %v161
                %v163 = vld [vmem:[%s155 + $0x18] sm:$0xf]
                %164 = vst [vmem:[%s156 + $0xc] sm:$0xf] %v163
                %v165 = vld [vmem:[%s155 + $0x20] sm:$0xf]
                %166 = vst [vmem:[%s156 + $0x10] sm:$0xf] %v165
                %v167 = vld [vmem:[%s155 + $0x28] sm:$0xf]
                %168 = vst [vmem:[%s156 + $0x14] sm:$0xf] %v167
                %v169 = vld [vmem:[%s155 + $0x30] sm:$0xf]
                %170 = vst [vmem:[%s156 + $0x18] sm:$0xf] %v169
                %v171 = vld [vmem:[%s155 + $0x38] sm:$0xf]
                %172 = vst [vmem:[%s156 + $0x1c] sm:$0xf] %v171
                %v173 = vld [vmem:[%s155 + $0x40] sm:$0xf]
                %174 = vst [vmem:[%s156 + $0x20] sm:$0xf] %v173
                %v175 = vld [vmem:[%s155 + $0x48] sm:$0xf]
                %176 = vst [vmem:[%s156 + $0x24] sm:$0xf] %v175
                %v177 = vld [vmem:[%s155 + $0x50] sm:$0xf]
                %178 = vst [vmem:[%s156 + $0x28] sm:$0xf] %v177
                %v179 = vld [vmem:[%s155 + $0x58] sm:$0xf]
                %180 = vst [vmem:[%s156 + $0x2c] sm:$0xf] %v179
                %v181 = vld [vmem:[%s155 + $0x60] sm:$0xf]
                %182 = vst [vmem:[%s156 + $0x30] sm:$0xf] %v181
                %v183 = vld [vmem:[%s155 + $0x68] sm:$0xf]
                %184 = vst [vmem:[%s156 + $0x34] sm:$0xf] %v183
                %v185 = vld [vmem:[%s155 + $0x70] sm:$0xf]
                %186 = vst [vmem:[%s156 + $0x38] sm:$0xf] %v185
                %v187 = vld [vmem:[%s155 + $0x78] sm:$0xf]
                %188 = vst [vmem:[%s156 + $0x3c] sm:$0xf] %v187
              $region41: #{vqa_forward.3} parent=35 // loop_footer
                %s154 = sadd.s32 1, %s150
              $region42: #{vqa_forward.3} parent=35 // loop_footer_branch
                %149 = sbr.rel target = $region38
              $region43: #{vqa_forward.3} parent=35 // loop_exit
                _
            $region36: #{vqa_forward.3} parent=27 // pred_fallthru
              _
          $region28: #{vqa_forward.3} parent=23 // pred_fallthru
            _
          %240 = vnop
        $region24: #{vqa_forward.3} parent=19 // pred_fallthru
          _
        // Predicated region
        $region62: #{vqa_forward.3} parent=19 // pred_check
          %p241 = pneg %p79
        $region63: #{vqa_forward.3} parent=19 // pred_check_branch
          %243 = sbr.rel (%p241) target = $region65
        $region64: #{vqa_forward.3} parent=19 // pred_region
          %p244 = scmp.lt.s32.totalorder %s12, 1
          %s245 = scalar_select %p244, %s12, 1
          %s246 = scalar_lea.vmem %s2, %s245
        $region65: #{vqa_forward.3} parent=19 // pred_fallthru
          _
      $region20: #{vqa_forward.3} parent=5 // pred_fallthru
        _
      %p247 = scmp.le.s32.totalorder 1, %s12
      %p248 = scmp.lt.s32.totalorder %s12, 3
      %p249 = pnand %p247, %p248
      %p250 = pneg %p249
      // Predicated region
      $region66: #{vqa_forward.3} parent=5 // pred_check
        _
      $region67: #{vqa_forward.3} parent=5 // pred_check_branch
        %252 = sbr.rel (%p249) target = $region69
      $region68: #{vqa_forward.3} parent=5 // pred_region
        %s253 = ssub.s32 %s12, 1
        %s254 = sand.u32 %s46, 1
        %s255 = sand.u32 %s46, 1
        %s256 = smul.addr %s255, 64
        %s257 = scalar_lea.vmem [#allocation2], %s256
        // Predicated region
        $region70: #{vqa_forward.3} parent=68 // pred_check
          %p258 = pneg %p59
        $region71: #{vqa_forward.3} parent=68 // pred_check_branch
          %260 = sbr.rel (%p258) target = $region73
        $region72: #{vqa_forward.3} parent=68 // pred_region
          _
        $region73: #{vqa_forward.3} parent=68 // pred_fallthru
          _
        %p261 = pneg %p33
        %p262 = pneg %p30
        %s263 = sand.u32 %s46, 1
        %s264 = sand.u32 %s46, 1
        %s265 = smul.addr %s264, 64
        %s266 = scalar_lea.vmem [#allocation2], %s265
        %p267 = pneg %p59
        %p268 = pneg %p56
        %p269 = scmp.lt.s32.totalorder %s17, 1
        %s270 = scalar_select %p269, %s17, 1
        %s271 = scalar_lea.vmem %s2, %s270
        %p272 = pneg %p85
        %p273 = pneg %p82
        %p274 = pneg %p111
        %p275 = pneg %p108
        %s276 = sand.u32 %s98, 1
        %s277 = scalar_lea.sflag [#allocation4], %s276
        %s278 = sand.u32 %s98, 1
        %s279 = smul.addr %s278, 2
        %s280 = scalar_lea.vmem [#allocation3], %s279
        %p281 = scmp.lt.s32.totalorder %s17, 1
        %s282 = scalar_select %p281, %s17, 1
        %s283 = scalar_lea.vmem %s2, %s282
        %v285 = vld [vmem:[%s0] sm:$0x3]
        %v286 = vpack.c.bf16 %v285, %v285
        %v287 = vld [vmem:[%s257] sm:$0xf]
        %v288 = vld [vmem:[%s257 + $0x4] sm:$0xf]
        %v289 = vld [vmem:[%s257 + $0x8] sm:$0xf]
        %v290 = vld [vmem:[%s257 + $0xc] sm:$0xf]
        %v291 = vld [vmem:[%s257 + $0x10] sm:$0xf]
        %v292 = vld [vmem:[%s257 + $0x14] sm:$0xf]
        %v293 = vld [vmem:[%s257 + $0x18] sm:$0xf]
        %v294 = vld [vmem:[%s257 + $0x1c] sm:$0xf]
        %v295 = vld [vmem:[%s257 + $0x20] sm:$0xf]
        %v296 = vld [vmem:[%s257 + $0x24] sm:$0xf]
        %v297 = vld [vmem:[%s257 + $0x28] sm:$0xf]
        %v298 = vld [vmem:[%s257 + $0x2c] sm:$0xf]
        %v299 = vld [vmem:[%s257 + $0x30] sm:$0xf]
        %v300 = vld [vmem:[%s257 + $0x34] sm:$0xf]
        %v301 = vld [vmem:[%s257 + $0x38] sm:$0xf]
        %v302 = vld [vmem:[%s257 + $0x3c] sm:$0xf]
        %v303 = vld [vmem:[%s283] sm:$0x1]
        %v305 = vlaneseq
        %v306 = vshrl.u32 %v305, 7
        %v307 = vsub.s32 0, %v306
        %v308 = vrot.slane %v303, %v307
        %v326 = vunpack.c.l.b16 %v287
        %v327 = vunpack.c.l.b16 %v288
        %v328 = vunpack.c.l.b16 %v289
        %v329 = vunpack.c.l.b16 %v290
        %v330 = vunpack.c.l.b16 %v291
        %v331 = vunpack.c.l.b16 %v292
        %v332 = vunpack.c.l.b16 %v293
        %v333 = vunpack.c.l.b16 %v294
        %v334 = vunpack.c.l.b16 %v295
        %v335 = vunpack.c.l.b16 %v296
        %v336 = vunpack.c.l.b16 %v297
        %v337 = vunpack.c.l.b16 %v298
        %v338 = vunpack.c.l.b16 %v299
        %v339 = vunpack.c.l.b16 %v300
        %v340 = vunpack.c.l.b16 %v301
        %v341 = vunpack.c.l.b16 %v302
        %v342 = vpack.c.b16 %v327, %v326
        %v343 = vpack.c.b16 %v329, %v328
        %v344 = vpack.c.b16 %v331, %v330
        %v345 = vpack.c.b16 %v333, %v332
        %v346 = vpack.c.b16 %v335, %v334
        %v347 = vpack.c.b16 %v337, %v336
        %v348 = vpack.c.b16 %v339, %v338
        %v349 = vpack.c.b16 %v341, %v340
        %358 = vmatprep.subr.bf16.mxu0 0
        %359 = vmatpush1.bf16.msra.mxu0 %v342
        %360 = vmatprep.subr.bf16.mxu0 0
        %361 = vmatpush1.bf16.msra.mxu0 %v343
        %362 = vmatprep.subr.bf16.mxu0 0
        %363 = vmatpush1.bf16.msra.mxu0 %v344
        %364 = vmatprep.subr.bf16.mxu0 0
        %365 = vmatpush1.bf16.msra.mxu0 %v345
        %366 = vmatprep.subr.bf16.mxu0 0
        %367 = vmatpush1.bf16.msra.mxu0 %v346
        %368 = vmatprep.subr.bf16.mxu0 0
        %369 = vmatpush1.bf16.msra.mxu0 %v347
        %370 = vmatprep.subr.bf16.mxu0 0
        %371 = vmatpush1.bf16.msra.mxu0 %v348
        %372 = vmatprep.subr.bf16.mxu0 0
        %373 = vmatpush1.bf16.msra.mxu0 %v349
        %374 = vmatprep.subr.bf16.mxu0 0
        %375 = vmatpush1.bf16.msra.mxu0 0
        %376 = vmatprep.subr.bf16.mxu0 0
        %377 = vmatpush1.bf16.msra.mxu0 0
        %378 = vmatprep.subr.bf16.mxu0 0
        %379 = vmatpush1.bf16.msra.mxu0 0
        %380 = vmatprep.subr.bf16.mxu0 0
        %381 = vmatpush1.bf16.msra.mxu0 0
        %382 = vmatprep.subr.bf16.mxu0 0
        %383 = vmatpush1.bf16.msra.mxu0 0
        %384 = vmatprep.subr.bf16.mxu0 0
        %385 = vmatpush1.bf16.msra.mxu0 0
        %386 = vmatprep.subr.bf16.mxu0 0
        %387 = vmatpush1.bf16.msra.mxu0 0
        %388 = vmatprep.subr.bf16.mxu0 0
        %389 = vmatpush1.bf16.msra.mxu0 0
        %390 = vmatprep.mubr.bf16.mxu0 0
        %391 = vmatmul.mubr.bf16.gmra.mrb[0].mxu0 %v286
        %v392 = vpop.f32.mrb[0].mxu0
        %v393 = vadd.f32 %v308, %v392
        %v394 = vpop.f32.mrb[0].mxu0
        %v395 = vpop.f32.mrb[0].mxu0
        %v396 = vpop.f32.mrb[0].mxu0
        %397 = vdwg.mxu0
        %398 = vst [vmem:[%s280] sm:$0x3] %v393
        %s399 = sand.u32 %s98, 1
        %s400 = scalar_lea.sflag [#allocation4], %s399
        %s401 = sand.u32 %s98, 1
        %s402 = smul.addr %s401, 2
        %s403 = scalar_lea.vmem [#allocation3], %s402
        // Predicated region
        $region74: #{vqa_forward.3} parent=68 // pred_check
          %p404 = pneg %p108
        $region75: #{vqa_forward.3} parent=68 // pred_check_branch
          %406 = sbr.rel (%p404) target = $region77
        $region76: #{vqa_forward.3} parent=68 // pred_region
          %s408 = ssub.s32 32, 32
          %409 = vsyncadd %s400, %s408
          %s410 = smul.addr %s17, 32
          %s411 = scalar_lea.hbm %s3, %s410
          %s413 = sshll.u32 %s403, 4
          %s414 = int_to_ptr.vmem [resolvable:$true] %s413
          %416 = dma.vmem_to_hbm [thread:$0]  %s414, 32, %s411, %s400
        $region77: #{vqa_forward.3} parent=68 // pred_fallthru
          _
      $region69: #{vqa_forward.3} parent=5 // pred_fallthru
        _
      %p417 = scmp.le.s32.totalorder 2, %s12
      // Predicated region
      $region78: #{vqa_forward.3} parent=5 // pred_check
        %p418 = pneg %p417
      $region79: #{vqa_forward.3} parent=5 // pred_check_branch
        %420 = sbr.rel (%p418) target = $region81
      $region80: #{vqa_forward.3} parent=5 // pred_region
        %s421 = ssub.s32 %s12, 2
        // Predicated region
        $region82: #{vqa_forward.3} parent=80 // pred_check
          %p422 = pneg %p114
        $region83: #{vqa_forward.3} parent=80 // pred_check_branch
          %424 = sbr.rel (%p422) target = $region85
        $region84: #{vqa_forward.3} parent=80 // pred_region
          %s425 = sand.u32 %s99, 1
          %s426 = scalar_lea.sflag [#allocation4], %s425
          %s427 = sand.u32 %s99, 1
          %s428 = smul.addr %s427, 2
          %s429 = scalar_lea.vmem [#allocation3], %s428
          %430 = dma.done %s426, 32
        $region85: #{vqa_forward.3} parent=80 // pred_fallthru
          _
      $region81: #{vqa_forward.3} parent=5 // pred_fallthru
        _
    $region6: #{vqa_forward.3} parent=1 // loop_footer
      %s16 = sadd.s32 1, %s12
    $region7: #{vqa_forward.3} parent=1 // loop_footer_branch
      %11 = sbr.rel target = $region3
    $region8: #{vqa_forward.3} parent=1 // loop_exit
      _
    %431 = vsyncpa [#allocation4], 1
    %s432 = scalar_lea.sflag [#allocation4], 1
    %433 = vsyncpa %s432, 1

// kernel: vqa_forward.2
$region0: #{vqa_forward.2}
  #allocation0 [shape = 'u32[]', space=smem, size = 0x4, offset = 0x4, fixed_abs, tag = 'smem constant byte address 0x4 - core index']
  #allocation1 [shape = 'u32[144,128]{1,0:T(1,128)}', space=vmem, size = 0x12000, scoped, tag = 'internal scratch']
  #allocation2 [shape = 'f32[1]{0:T(128)S(6)}', space=smem, size = 0x200, scoped, tag = 'scoped memory for vqa_forward.2']
  %s0 = inlined_call_operand.hbm [shape: f32[2,16,128], index: 0, kind: input, shape index: {}]
  %s1 = inlined_call_operand.hbm [shape: f32[2,128], index: 1, kind: input, shape index: {}]
  %s2 = inlined_call_operand.hbm [shape: bf16[128,128], index: 2, kind: input, shape index: {}]
  %s3 = inlined_call_operand.hbm [shape: f32[1,128], index: 3, kind: input, shape index: {}]
  %s4 = inlined_call_operand.hbm [shape: bf16[128,128], index: 4, kind: input, shape index: {}]
  %s5 = inlined_call_operand.hbm [shape: f32[1,128], index: 5, kind: input, shape index: {}]
  %s6 = inlined_call_operand.hbm [shape: bf16[128,128], index: 6, kind: input, shape index: {}]
  %s7 = inlined_call_operand.hbm [shape: f32[1,128], index: 7, kind: input, shape index: {}]
  %s8 = inlined_call_operand.vmem [shape: f32[1,128], index: 8, kind: input, shape index: {}]
  %s9 = inlined_call_operand.<no memory space> [shape: f32[1], index: 9, kind: input, shape index: {}]
  %s10 = inlined_call_operand.vmem [shape: f32[2,128], index: 10, kind: output, shape index: {}]
  %s11 = sld [smem:[#allocation0]]
  $region82: #{vqa_forward.2} parent=0
    _
  %s13 = ssub.s32 1, %s11
  %s14 = scalar_select 0, %s13, %s11
  %15 = sst [smem:[#allocation2]] %s9
  $region1: #{vqa_forward.2} parent=0
    #allocation3 [shape = 'u8[16384]{0}', space=vmem, size = 0x4000, scoped, tag = 'input window, operand 0, single buffered']
    #allocation4 [shape = 's32[1]{0}', space=sflag, size = 0x4, scoped, tag = 'scoped memory for vqa_forward.2']
    #allocation5 [shape = 'u8[1024]{0}', space=vmem, size = 0x400, scoped, tag = 'input window, operand 1, single buffered']
    #allocation6 [shape = 's32[1]{0}', space=sflag, size = 0x4, scoped, tag = 'scoped memory for vqa_forward.2']
    #allocation7 [shape = 'u8[32768]{0}', space=vmem, size = 0x8000, scoped, tag = 'input window, operand 2, single buffered']
    #allocation8 [shape = 'u8[512]{0}', space=vmem, size = 0x400, scoped, tag = 'input window, operand 3, single buffered']
    #allocation9 [shape = 's32[1]{0}', space=sflag, size = 0x4, scoped, tag = 'scoped memory for vqa_forward.2']
    #allocation10 [shape = 'u8[32768]{0}', space=vmem, size = 0x8000, scoped, tag = 'input window, operand 4, single buffered']
    #allocation11 [shape = 'u8[512]{0}', space=vmem, size = 0x400, scoped, tag = 'input window, operand 5, single buffered']
    #allocation12 [shape = 's32[1]{0}', space=sflag, size = 0x4, scoped, tag = 'scoped memory for vqa_forward.2']
    #allocation13 [shape = 'u8[32768]{0}', space=vmem, size = 0x8000, scoped, tag = 'input window, operand 6, single buffered']
    #allocation14 [shape = 'u8[512]{0}', space=vmem, size = 0x400, scoped, tag = 'input window, operand 7, single buffered']
    #allocation15 [shape = 's32[1]{0}', space=sflag, size = 0x4, scoped, tag = 'scoped memory for vqa_forward.2']
    %16 = vsyncpa [#allocation4], 0
    %17 = vsyncpa [#allocation6], 0
    %18 = vsyncpa [#allocation9], 0
    %19 = vsyncpa [#allocation12], 0
    %20 = vsyncpa [#allocation15], 0
    // Predicated region
    $region2: #{vqa_forward.2} parent=1 // pred_check
      _
    $region3: #{vqa_forward.2} parent=1 // pred_check_branch
      %22 = sbr.rel (0) target = $region5
    $region4: #{vqa_forward.2} parent=1 // pred_region
      %s24 = ssub.s32 512, 512
      %25 = vsyncadd [#allocation4], %s24
      %s26 = sshll.u32 [#allocation3], 4
      %s27 = int_to_ptr.vmem [resolvable:$true] %s26
      %32 = dma.hbm_to_vmem [thread:$0]  %s0, 512, %s27, [#allocation4], 128, 128, 8
    $region5: #{vqa_forward.2} parent=1 // pred_fallthru
      _
    // Predicated region
    $region6: #{vqa_forward.2} parent=1 // pred_check
      _
    $region7: #{vqa_forward.2} parent=1 // pred_check_branch
      %34 = sbr.rel (0) target = $region9
    $region8: #{vqa_forward.2} parent=1 // pred_region
      %s36 = ssub.s32 32, 32
      %37 = vsyncadd [#allocation6], %s36
      %s39 = sshll.u32 [#allocation5], 4
      %s40 = int_to_ptr.vmem [resolvable:$true] %s39
      %42 = dma.hbm_to_vmem [thread:$0]  %s1, 32, %s40, [#allocation6]
    $region9: #{vqa_forward.2} parent=1 // pred_fallthru
      _
    // Predicated region
    $region10: #{vqa_forward.2} parent=1 // pred_check
      _
    $region11: #{vqa_forward.2} parent=1 // pred_check_branch
      %44 = sbr.rel (0) target = $region13
    $region12: #{vqa_forward.2} parent=1 // pred_region
      %s46 = ssub.s32 1024, 1024
      %47 = vsyncadd [#allocation6], %s46
      %s48 = sshll.u32 [#allocation7], 4
      %s49 = int_to_ptr.vmem [resolvable:$true] %s48
      %54 = dma.hbm_to_vmem [thread:$0]  %s2, 1024, %s49, [#allocation6], 64, 64, 4
    $region13: #{vqa_forward.2} parent=1 // pred_fallthru
      _
    // Predicated region
    $region14: #{vqa_forward.2} parent=1 // pred_check
      _
    $region15: #{vqa_forward.2} parent=1 // pred_check_branch
      %56 = sbr.rel (0) target = $region17
    $region16: #{vqa_forward.2} parent=1 // pred_region
      %s58 = ssub.s32 16, 16
      %59 = vsyncadd [#allocation9], %s58
      %s61 = sshll.u32 [#allocation8], 4
      %s62 = int_to_ptr.vmem [resolvable:$true] %s61
      %64 = dma.hbm_to_vmem [thread:$0]  %s3, 16, %s62, [#allocation9]
    $region17: #{vqa_forward.2} parent=1 // pred_fallthru
      _
    // Predicated region
    $region18: #{vqa_forward.2} parent=1 // pred_check
      _
    $region19: #{vqa_forward.2} parent=1 // pred_check_branch
      %66 = sbr.rel (0) target = $region21
    $region20: #{vqa_forward.2} parent=1 // pred_region
      %s68 = ssub.s32 1024, 1024
      %69 = vsyncadd [#allocation9], %s68
      %s70 = sshll.u32 [#allocation10], 4
      %s71 = int_to_ptr.vmem [resolvable:$true] %s70
      %76 = dma.hbm_to_vmem [thread:$0]  %s4, 1024, %s71, [#allocation9], 64, 64, 4
    $region21: #{vqa_forward.2} parent=1 // pred_fallthru
      _
    // Predicated region
    $region22: #{vqa_forward.2} parent=1 // pred_check
      _
    $region23: #{vqa_forward.2} parent=1 // pred_check_branch
      %78 = sbr.rel (0) target = $region25
    $region24: #{vqa_forward.2} parent=1 // pred_region
      %s80 = ssub.s32 16, 16
      %81 = vsyncadd [#allocation12], %s80
      %s83 = sshll.u32 [#allocation11], 4
      %s84 = int_to_ptr.vmem [resolvable:$true] %s83
      %86 = dma.hbm_to_vmem [thread:$0]  %s5, 16, %s84, [#allocation12]
    $region25: #{vqa_forward.2} parent=1 // pred_fallthru
      _
    // Predicated region
    $region26: #{vqa_forward.2} parent=1 // pred_check
      _
    $region27: #{vqa_forward.2} parent=1 // pred_check_branch
      %88 = sbr.rel (0) target = $region29
    $region28: #{vqa_forward.2} parent=1 // pred_region
      %s90 = ssub.s32 1024, 1024
      %91 = vsyncadd [#allocation12], %s90
      %s92 = sshll.u32 [#allocation13], 4
      %s93 = int_to_ptr.vmem [resolvable:$true] %s92
      %98 = dma.hbm_to_vmem [thread:$0]  %s6, 1024, %s93, [#allocation12], 64, 64, 4
    $region29: #{vqa_forward.2} parent=1 // pred_fallthru
      _
    // Predicated region
    $region30: #{vqa_forward.2} parent=1 // pred_check
      _
    $region31: #{vqa_forward.2} parent=1 // pred_check_branch
      %100 = sbr.rel (0) target = $region33
    $region32: #{vqa_forward.2} parent=1 // pred_region
      %s102 = ssub.s32 16, 16
      %103 = vsyncadd [#allocation15], %s102
      %s105 = sshll.u32 [#allocation14], 4
      %s106 = int_to_ptr.vmem [resolvable:$true] %s105
      %108 = dma.hbm_to_vmem [thread:$0]  %s7, 16, %s106, [#allocation15]
    $region33: #{vqa_forward.2} parent=1 // pred_fallthru
      _
    // Predicated region
    $region34: #{vqa_forward.2} parent=1 // pred_check
      _
    $region35: #{vqa_forward.2} parent=1 // pred_check_branch
      %110 = sbr.rel (0) target = $region37
    $region36: #{vqa_forward.2} parent=1 // pred_region
      _
    $region37: #{vqa_forward.2} parent=1 // pred_fallthru
      _
    // Predicated region
    $region38: #{vqa_forward.2} parent=1 // pred_check
      _
    $region39: #{vqa_forward.2} parent=1 // pred_check_branch
      %112 = sbr.rel (0) target = $region41
    $region40: #{vqa_forward.2} parent=1 // pred_region
      _
    $region41: #{vqa_forward.2} parent=1 // pred_fallthru
      _
    // Predicated region
    $region42: #{vqa_forward.2} parent=1 // pred_check
      _
    $region43: #{vqa_forward.2} parent=1 // pred_check_branch
      %114 = sbr.rel (0) target = $region45
    $region44: #{vqa_forward.2} parent=1 // pred_region
      %115 = dma.done [#allocation4], 512
    $region45: #{vqa_forward.2} parent=1 // pred_fallthru
      _
    // Predicated region
    $region46: #{vqa_forward.2} parent=1 // pred_check
      _
    $region47: #{vqa_forward.2} parent=1 // pred_check_branch
      %117 = sbr.rel (0) target = $region49
    $region48: #{vqa_forward.2} parent=1 // pred_region
      %118 = dma.done [#allocation6], 32
    $region49: #{vqa_forward.2} parent=1 // pred_fallthru
      _
    // Predicated region
    $region50: #{vqa_forward.2} parent=1 // pred_check
      _
    $region51: #{vqa_forward.2} parent=1 // pred_check_branch
      %120 = sbr.rel (0) target = $region53
    $region52: #{vqa_forward.2} parent=1 // pred_region
      %121 = dma.done [#allocation6], 1024
    $region53: #{vqa_forward.2} parent=1 // pred_fallthru
      _
    // Predicated region
    $region54: #{vqa_forward.2} parent=1 // pred_check
      _
    $region55: #{vqa_forward.2} parent=1 // pred_check_branch
      %123 = sbr.rel (0) target = $region57
    $region56: #{vqa_forward.2} parent=1 // pred_region
      %124 = dma.done [#allocation9], 16
    $region57: #{vqa_forward.2} parent=1 // pred_fallthru
      _
    // Predicated region
    $region58: #{vqa_forward.2} parent=1 // pred_check
      _
    $region59: #{vqa_forward.2} parent=1 // pred_check_branch
      %126 = sbr.rel (0) target = $region61
    $region60: #{vqa_forward.2} parent=1 // pred_region
      %127 = dma.done [#allocation9], 1024
    $region61: #{vqa_forward.2} parent=1 // pred_fallthru
      _
    // Predicated region
    $region62: #{vqa_forward.2} parent=1 // pred_check
      _
    $region63: #{vqa_forward.2} parent=1 // pred_check_branch
      %129 = sbr.rel (0) target = $region65
    $region64: #{vqa_forward.2} parent=1 // pred_region
      %130 = dma.done [#allocation12], 16
    $region65: #{vqa_forward.2} parent=1 // pred_fallthru
      _
    // Predicated region
    $region66: #{vqa_forward.2} parent=1 // pred_check
      _
    $region67: #{vqa_forward.2} parent=1 // pred_check_branch
      %132 = sbr.rel (0) target = $region69
    $region68: #{vqa_forward.2} parent=1 // pred_region
      %133 = dma.done [#allocation12], 1024
    $region69: #{vqa_forward.2} parent=1 // pred_fallthru
      _
    // Predicated region
    $region70: #{vqa_forward.2} parent=1 // pred_check
      _
    $region71: #{vqa_forward.2} parent=1 // pred_check_branch
      %135 = sbr.rel (0) target = $region73
    $region72: #{vqa_forward.2} parent=1 // pred_region
      %136 = dma.done [#allocation15], 16
    $region73: #{vqa_forward.2} parent=1 // pred_fallthru
      _
    %v138 = vld [vmem:[#allocation3] sm:$0xff]
    %v139 = vld [vmem:[#allocation3 + $0x8] sm:$0xff]
    %v140 = vld [vmem:[#allocation3 + $0x10] sm:$0xff]
    %v141 = vld [vmem:[#allocation3 + $0x18] sm:$0xff]
    %v142 = vpack.c.bf16 %v139, %v138
    %v143 = vpack.c.bf16 %v141, %v140
    %v144 = vld [vmem:[#allocation7] sm:$0xf]
    %v145 = vld [vmem:[#allocation7 + $0x4] sm:$0xf]
    %v146 = vld [vmem:[#allocation7 + $0x8] sm:$0xf]
    %v147 = vld [vmem:[#allocation7 + $0xc] sm:$0xf]
    %v148 = vld [vmem:[#allocation7 + $0x10] sm:$0xf]
    %v149 = vld [vmem:[#allocation7 + $0x14] sm:$0xf]
    %v150 = vld [vmem:[#allocation7 + $0x18] sm:$0xf]
    %v151 = vld [vmem:[#allocation7 + $0x1c] sm:$0xf]
    %v152 = vld [vmem:[#allocation7 + $0x20] sm:$0xf]
    %v153 = vld [vmem:[#allocation7 + $0x24] sm:$0xf]
    %v154 = vld [vmem:[#allocation7 + $0x28] sm:$0xf]
    %v155 = vld [vmem:[#allocation7 + $0x2c] sm:$0xf]
    %v156 = vld [vmem:[#allocation7 + $0x30] sm:$0xf]
    %v157 = vld [vmem:[#allocation7 + $0x34] sm:$0xf]
    %v158 = vld [vmem:[#allocation7 + $0x38] sm:$0xf]
    %v159 = vld [vmem:[#allocation7 + $0x3c] sm:$0xf]
    %v160 = vld [vmem:[#allocation8] sm:$0x1]
    %v162 = vlaneseq
    %v163 = vshrl.u32 %v162, 7
    %v164 = vsub.s32 0, %v163
    %v165 = vrot.slane %v160, %v164
    %v183 = vunpack.c.l.b16 %v144
    %v184 = vunpack.c.l.b16 %v145
    %v185 = vunpack.c.l.b16 %v146
    %v186 = vunpack.c.l.b16 %v147
    %v187 = vunpack.c.l.b16 %v148
    %v188 = vunpack.c.l.b16 %v149
    %v189 = vunpack.c.l.b16 %v150
    %v190 = vunpack.c.l.b16 %v151
    %v191 = vunpack.c.l.b16 %v152
    %v192 = vunpack.c.l.b16 %v153
    %v193 = vunpack.c.l.b16 %v154
    %v194 = vunpack.c.l.b16 %v155
    %v195 = vunpack.c.l.b16 %v156
    %v196 = vunpack.c.l.b16 %v157
    %v197 = vunpack.c.l.b16 %v158
    %v198 = vunpack.c.l.b16 %v159
    %v199 = vpack.c.b16 %v184, %v183
    %v200 = vpack.c.b16 %v186, %v185
    %v201 = vpack.c.b16 %v188, %v187
    %v202 = vpack.c.b16 %v190, %v189
    %v203 = vpack.c.b16 %v192, %v191
    %v204 = vpack.c.b16 %v194, %v193
    %v205 = vpack.c.b16 %v196, %v195
    %v206 = vpack.c.b16 %v198, %v197
    %215 = vmatprep.subr.bf16.mxu0 0
    %216 = vmatpush1.bf16.msra.mxu0 %v199
    %217 = vmatprep.subr.bf16.mxu0 0
    %218 = vmatpush1.bf16.msra.mxu0 %v200
    %219 = vmatprep.subr.bf16.mxu0 0
    %220 = vmatpush1.bf16.msra.mxu0 %v201
    %221 = vmatprep.subr.bf16.mxu0 0
    %222 = vmatpush1.bf16.msra.mxu0 %v202
    %223 = vmatprep.subr.bf16.mxu0 0
    %224 = vmatpush1.bf16.msra.mxu0 %v203
    %225 = vmatprep.subr.bf16.mxu0 0
    %226 = vmatpush1.bf16.msra.mxu0 %v204
    %227 = vmatprep.subr.bf16.mxu0 0
    %228 = vmatpush1.bf16.msra.mxu0 %v205
    %229 = vmatprep.subr.bf16.mxu0 0
    %230 = vmatpush1.bf16.msra.mxu0 %v206
    %231 = vmatprep.subr.bf16.mxu0 0
    %232 = vmatpush1.bf16.msra.mxu0 0
    %233 = vmatprep.subr.bf16.mxu0 0
    %234 = vmatpush1.bf16.msra.mxu0 0
    %235 = vmatprep.subr.bf16.mxu0 0
    %236 = vmatpush1.bf16.msra.mxu0 0
    %237 = vmatprep.subr.bf16.mxu0 0
    %238 = vmatpush1.bf16.msra.mxu0 0
    %239 = vmatprep.subr.bf16.mxu0 0
    %240 = vmatpush1.bf16.msra.mxu0 0
    %241 = vmatprep.subr.bf16.mxu0 0
    %242 = vmatpush1.bf16.msra.mxu0 0
    %243 = vmatprep.subr.bf16.mxu0 0
    %244 = vmatpush1.bf16.msra.mxu0 0
    %245 = vmatprep.subr.bf16.mxu0 0
    %246 = vmatpush1.bf16.msra.mxu0 0
    %247 = vmatprep.mubr.bf16.mxu0 0
    %248 = vmatmul.mubr.bf16.gmra.mrb[0].mxu0 %v142
    %v249 = vpop.f32.mrb[0].mxu0
    %v250 = vadd.f32 %v165, %v249
    %v251 = vpop.f32.mrb[0].mxu0
    %v252 = vpop.f32.mrb[0].mxu0
    %v253 = vadd.f32 %v165, %v252
    %v254 = vpop.f32.mrb[0].mxu0
    %255 = vmatprep.mubr.bf16.mxu0 0
    %256 = vmatmul.mubr.bf16.gmra.mrb[0].mxu0 %v143
    %v257 = vpop.f32.mrb[0].mxu0
    %v258 = vadd.f32 %v165, %v257
    %v259 = vpop.f32.mrb[0].mxu0
    %v260 = vpop.f32.mrb[0].mxu0
    %v261 = vadd.f32 %v165, %v260
    %v262 = vpop.f32.mrb[0].mxu0
    %263 = vdwg.mxu0
    %v264 = vtanh.pop %v250
    %v265 = vtanh.pop %v253
    %v266 = vtanh.pop %v258
    %v267 = vtanh.pop %v261
    %v268 = vpack.c.bf16 %v265, %v264
    %v269 = vpack.c.bf16 %v267, %v266
    %v270 = vld [vmem:[#allocation10] sm:$0xf]
    %v271 = vld [vmem:[#allocation10 + $0x4] sm:$0xf]
    %v272 = vld [vmem:[#allocation10 + $0x8] sm:$0xf]
    %v273 = vld [vmem:[#allocation10 + $0xc] sm:$0xf]
    %v274 = vld [vmem:[#allocation10 + $0x10] sm:$0xf]
    %v275 = vld [vmem:[#allocation10 + $0x14] sm:$0xf]
    %v276 = vld [vmem:[#allocation10 + $0x18] sm:$0xf]
    %v277 = vld [vmem:[#allocation10 + $0x1c] sm:$0xf]
    %v278 = vld [vmem:[#allocation10 + $0x20] sm:$0xf]
    %v279 = vld [vmem:[#allocation10 + $0x24] sm:$0xf]
    %v280 = vld [vmem:[#allocation10 + $0x28] sm:$0xf]
    %v281 = vld [vmem:[#allocation10 + $0x2c] sm:$0xf]
    %v282 = vld [vmem:[#allocation10 + $0x30] sm:$0xf]
    %v283 = vld [vmem:[#allocation10 + $0x34] sm:$0xf]
    %v284 = vld [vmem:[#allocation10 + $0x38] sm:$0xf]
    %v285 = vld [vmem:[#allocation10 + $0x3c] sm:$0xf]
    %v286 = vld [vmem:[#allocation11] sm:$0x1]
    %v288 = vlaneseq
    %v289 = vshrl.u32 %v288, 7
    %v290 = vsub.s32 0, %v289
    %v291 = vrot.slane %v286, %v290
    %v309 = vunpack.c.l.b16 %v270
    %v310 = vunpack.c.l.b16 %v271
    %v311 = vunpack.c.l.b16 %v272
    %v312 = vunpack.c.l.b16 %v273
    %v313 = vunpack.c.l.b16 %v274
    %v314 = vunpack.c.l.b16 %v275
    %v315 = vunpack.c.l.b16 %v276
    %v316 = vunpack.c.l.b16 %v277
    %v317 = vunpack.c.l.b16 %v278
    %v318 = vunpack.c.l.b16 %v279
    %v319 = vunpack.c.l.b16 %v280
    %v320 = vunpack.c.l.b16 %v281
    %v321 = vunpack.c.l.b16 %v282
    %v322 = vunpack.c.l.b16 %v283
    %v323 = vunpack.c.l.b16 %v284
    %v324 = vunpack.c.l.b16 %v285
    %v325 = vpack.c.b16 %v310, %v309
    %v326 = vpack.c.b16 %v312, %v311
    %v327 = vpack.c.b16 %v314, %v313
    %v328 = vpack.c.b16 %v316, %v315
    %v329 = vpack.c.b16 %v318, %v317
    %v330 = vpack.c.b16 %v320, %v319
    %v331 = vpack.c.b16 %v322, %v321
    %v332 = vpack.c.b16 %v324, %v323
    %341 = vmatprep.subr.bf16.mxu0 0
    %342 = vmatpush1.bf16.msra.mxu0 %v325
    %343 = vmatprep.subr.bf16.mxu0 0
    %344 = vmatpush1.bf16.msra.mxu0 %v326
    %345 = vmatprep.subr.bf16.mxu0 0
    %346 = vmatpush1.bf16.msra.mxu0 %v327
    %347 = vmatprep.subr.bf16.mxu0 0
    %348 = vmatpush1.bf16.msra.mxu0 %v328
    %349 = vmatprep.subr.bf16.mxu0 0
    %350 = vmatpush1.bf16.msra.mxu0 %v329
    %351 = vmatprep.subr.bf16.mxu0 0
    %352 = vmatpush1.bf16.msra.mxu0 %v330
    %353 = vmatprep.subr.bf16.mxu0 0
    %354 = vmatpush1.bf16.msra.mxu0 %v331
    %355 = vmatprep.subr.bf16.mxu0 0
    %356 = vmatpush1.bf16.msra.mxu0 %v332
    %357 = vmatprep.subr.bf16.mxu0 0
    %358 = vmatpush1.bf16.msra.mxu0 0
    %359 = vmatprep.subr.bf16.mxu0 0
    %360 = vmatpush1.bf16.msra.mxu0 0
    %361 = vmatprep.subr.bf16.mxu0 0
    %362 = vmatpush1.bf16.msra.mxu0 0
    %363 = vmatprep.subr.bf16.mxu0 0
    %364 = vmatpush1.bf16.msra.mxu0 0
    %365 = vmatprep.subr.bf16.mxu0 0
    %366 = vmatpush1.bf16.msra.mxu0 0
    %367 = vmatprep.subr.bf16.mxu0 0
    %368 = vmatpush1.bf16.msra.mxu0 0
    %369 = vmatprep.subr.bf16.mxu0 0
    %370 = vmatpush1.bf16.msra.mxu0 0
    %371 = vmatprep.subr.bf16.mxu0 0
    %372 = vmatpush1.bf16.msra.mxu0 0
    %373 = vmatprep.mubr.bf16.mxu0 0
    %374 = vmatmul.mubr.bf16.gmra.mrb[0].mxu0 %v268
    %v375 = vpop.f32.mrb[0].mxu0
    %v376 = vadd.f32 %v291, %v375
    %v377 = vpop.f32.mrb[0].mxu0
    %v378 = vpop.f32.mrb[0].mxu0
    %v379 = vadd.f32 %v291, %v378
    %v380 = vpop.f32.mrb[0].mxu0
    %381 = vmatprep.mubr.bf16.mxu0 0
    %382 = vmatmul.mubr.bf16.gmra.mrb[0].mxu0 %v269
    %v383 = vpop.f32.mrb[0].mxu0
    %v384 = vadd.f32 %v291, %v383
    %v385 = vpop.f32.mrb[0].mxu0
    %v386 = vpop.f32.mrb[0].mxu0
    %v387 = vadd.f32 %v291, %v386
    %v388 = vpop.f32.mrb[0].mxu0
    %389 = vdwg.mxu0
    %v390 = vld [vmem:[%s8] sm:$0x1]
    %s391 = sld [smem:[#allocation2]]
    %v392 = vld [vmem:[#allocation5] sm:$0x3]
    %v393 = vpack.c.bf16 %v392, %v392
    %v394 = vld [vmem:[#allocation13] sm:$0xf]
    %v395 = vld [vmem:[#allocation13 + $0x4] sm:$0xf]
    %v396 = vld [vmem:[#allocation13 + $0x8] sm:$0xf]
    %v397 = vld [vmem:[#allocation13 + $0xc] sm:$0xf]
    %v398 = vld [vmem:[#allocation13 + $0x10] sm:$0xf]
    %v399 = vld [vmem:[#allocation13 + $0x14] sm:$0xf]
    %v400 = vld [vmem:[#allocation13 + $0x18] sm:$0xf]
    %v401 = vld [vmem:[#allocation13 + $0x1c] sm:$0xf]
    %v402 = vld [vmem:[#allocation13 + $0x20] sm:$0xf]
    %v403 = vld [vmem:[#allocation13 + $0x24] sm:$0xf]
    %v404 = vld [vmem:[#allocation13 + $0x28] sm:$0xf]
    %v405 = vld [vmem:[#allocation13 + $0x2c] sm:$0xf]
    %v406 = vld [vmem:[#allocation13 + $0x30] sm:$0xf]
    %v407 = vld [vmem:[#allocation13 + $0x34] sm:$0xf]
    %v408 = vld [vmem:[#allocation13 + $0x38] sm:$0xf]
    %v409 = vld [vmem:[#allocation13 + $0x3c] sm:$0xf]
    %v410 = vld [vmem:[#allocation14] sm:$0x1]
    %v412 = vlaneseq
    %v413 = vshrl.u32 %v412, 7
    %v414 = vsub.s32 0, %v413
    %v415 = vrot.slane %v410, %v414
    %v433 = vunpack.c.l.b16 %v394
    %v434 = vunpack.c.l.b16 %v395
    %v435 = vunpack.c.l.b16 %v396
    %v436 = vunpack.c.l.b16 %v397
    %v437 = vunpack.c.l.b16 %v398
    %v438 = vunpack.c.l.b16 %v399
    %v439 = vunpack.c.l.b16 %v400
    %v440 = vunpack.c.l.b16 %v401
    %v441 = vunpack.c.l.b16 %v402
    %v442 = vunpack.c.l.b16 %v403
    %v443 = vunpack.c.l.b16 %v404
    %v444 = vunpack.c.l.b16 %v405
    %v445 = vunpack.c.l.b16 %v406
    %v446 = vunpack.c.l.b16 %v407
    %v447 = vunpack.c.l.b16 %v408
    %v448 = vunpack.c.l.b16 %v409
    %v449 = vpack.c.b16 %v434, %v433
    %v450 = vpack.c.b16 %v436, %v435
    %v451 = vpack.c.b16 %v438, %v437
    %v452 = vpack.c.b16 %v440, %v439
    %v453 = vpack.c.b16 %v442, %v441
    %v454 = vpack.c.b16 %v444, %v443
    %v455 = vpack.c.b16 %v446, %v445
    %v456 = vpack.c.b16 %v448, %v447
    %465 = vmatprep.subr.bf16.mxu0 0
    %466 = vmatpush1.bf16.msra.mxu0 %v449
    %467 = vmatprep.subr.bf16.mxu0 0
    %468 = vmatpush1.bf16.msra.mxu0 %v450
    %469 = vmatprep.subr.bf16.mxu0 0
    %470 = vmatpush1.bf16.msra.mxu0 %v451
    %471 = vmatprep.subr.bf16.mxu0 0
    %472 = vmatpush1.bf16.msra.mxu0 %v452
    %473 = vmatprep.subr.bf16.mxu0 0
    %474 = vmatpush1.bf16.msra.mxu0 %v453
    %475 = vmatprep.subr.bf16.mxu0 0
    %476 = vmatpush1.bf16.msra.mxu0 %v454
    %477 = vmatprep.subr.bf16.mxu0 0
    %478 = vmatpush1.bf16.msra.mxu0 %v455
    %479 = vmatprep.subr.bf16.mxu0 0
    %480 = vmatpush1.bf16.msra.mxu0 %v456
    %481 = vmatprep.subr.bf16.mxu0 0
    %482 = vmatpush1.bf16.msra.mxu0 0
    %483 = vmatprep.subr.bf16.mxu0 0
    %484 = vmatpush1.bf16.msra.mxu0 0
    %485 = vmatprep.subr.bf16.mxu0 0
    %486 = vmatpush1.bf16.msra.mxu0 0
    %487 = vmatprep.subr.bf16.mxu0 0
    %488 = vmatpush1.bf16.msra.mxu0 0
    %489 = vmatprep.subr.bf16.mxu0 0
    %490 = vmatpush1.bf16.msra.mxu0 0
    %491 = vmatprep.subr.bf16.mxu0 0
    %492 = vmatpush1.bf16.msra.mxu0 0
    %493 = vmatprep.subr.bf16.mxu0 0
    %494 = vmatpush1.bf16.msra.mxu0 0
    %495 = vmatprep.subr.bf16.mxu0 0
    %496 = vmatpush1.bf16.msra.mxu0 0
    %497 = vmatprep.mubr.bf16.mxu0 0
    %498 = vmatmul.mubr.bf16.gmra.mrb[0].mxu0 %v393
    %v499 = vpop.f32.mrb[0].mxu0
    %v500 = vadd.f32 %v415, %v499
    %v501 = vpop.f32.mrb[0].mxu0
    %v502 = vpop.f32.mrb[0].mxu0
    %v503 = vpop.f32.mrb[0].mxu0
    %504 = vdwg.mxu0
    %v507 = vunpack.c.l.s4 1966171168
    %v508 = vunpack.c.0.s8 %v507
    %v509 = vlaneseq
    %v510 = vshrl.u32 %v509, 7
    %v511 = vsub.s32 %v508, %v510
    %v512 = vrot.slane %v500, %v511
    %v513 = vcombine.high %v512, %v512
    %v515 = vunpack.c.l.s4 1966171168
    %v516 = vunpack.c.0.s8 %v515
    %v517 = vlaneseq
    %v518 = vshrl.u32 %v517, 7
    %v519 = vsub.s32 %v516, %v518
    %v520 = vrot.slane %v512, %v519
    %v522 = vunpack.c.l.s4 1966171168
    %v523 = vunpack.c.0.s8 %v522
    %v524 = vlaneseq
    %v525 = vshrl.u32 %v524, 7
    %v526 = vsub.s32 %v523, %v525
    %v527 = vrot.slane %v513, %v526
    %v528 = vlaneseq
    %v529 = vshrl.u32 %v528, 7
    %v530 = vsub.s32 0, %v529
    %v531 = vrot.slane %v520, %v530
    %v532 = vlaneseq
    %v533 = vshrl.u32 %v532, 7
    %v534 = vsub.s32 0, %v533
    %v535 = vrot.slane %v527, %v534
    %v538 = vadd.f32 %v376, %v531
    %v539 = vadd.f32 %v379, %v531
    %v540 = vadd.f32 %v384, %v535
    %v541 = vadd.f32 %v387, %v535
    %v542 = vtanh.pop %v538
    %v543 = vtanh.pop %v539
    %v544 = vtanh.pop %v540
    %v545 = vtanh.pop %v541
    %v547 = vlaneseq
    %v548 = vshrl.u32 %v547, 7
    %v549 = vsub.s32 0, %v548
    %v550 = vrot.slane %v390, %v549
    %v552 = vmul.f32 %v542, %v550
    %v553 = vmul.f32 %v543, %v550
    %v554 = vmul.f32 %v544, %v550
    %v555 = vmul.f32 %v545, %v550
    %556 = vadd.xlane.f32.xlu0 %v552
    %v557 = vpop.xlane.xlu0 %556
    %558 = vadd.xlane.f32.xlu0 %v553
    %v559 = vpop.xlane.xlu0 %558
    %560 = vadd.xlane.f32.xlu0 %v554
    %v561 = vpop.xlane.xlu0 %560
    %562 = vadd.xlane.f32.xlu0 %v555
    %v563 = vpop.xlane.xlu0 %562
    %v564 = vstv %s391
    %v565 = vadd.f32 %v557, %v564
    %v566 = vadd.f32 %v559, %v564
    %v567 = vadd.f32 %v561, %v564
    %v568 = vadd.f32 %v563, %v564
    %v573 = vlaneseq
    %v574 = vand.u32 %v573, 127
    %v575 = vlaneseq
    %v576 = vshrl.u32 %v575, 7
    %v577 = vsub.s32 %v574, %v576
    %v578 = vrot.slane %v565, %v577
    %v579 = vadd.s32 %v574, 4294967288
    %v580 = vlaneseq
    %v581 = vshrl.u32 %v580, 7
    %v582 = vsub.s32 %v579, %v581
    %v583 = vrot.slane %v566, %v582
    %vm584 = vcmask 130112
    %v585 = vsel %vm584, %v583, %v578
    %v586 = vlaneseq
    %v587 = vshrl.u32 %v586, 7
    %v588 = vsub.s32 %v574, %v587
    %v589 = vrot.slane %v567, %v588
    %v590 = vlaneseq
    %v591 = vshrl.u32 %v590, 7
    %v592 = vsub.s32 %v579, %v591
    %v593 = vrot.slane %v568, %v592
    %v594 = vsel %vm584, %v593, %v589
    %vm595 = vcmask 1041409
    %v596 = vsel %vm595, %v594, %v585
    %vm598 = vcmask 123904
    %v599 = vsel %vm598, %v596, -inf
    %600 = vmax.xlane.f32.xlu0 %v599
    %v601 = vpop.xlane.xlu0 %600
    %v603 = vlaneseq
    %v604 = vshrl.u32 %v603, 7
    %v605 = vsub.s32 0, %v604
    %v606 = vrot.slane %v601, %v605
    %v607 = vlaneseq
    %v608 = vshrl.u32 %v607, 7
    %v609 = vsub.s32 1, %v608
    %v610 = vrot.slane %v601, %v609
    %v613 = vsub.f32 %v565, %v606
    %v614 = vsub.f32 %v566, %v606
    %v615 = vsub.f32 %v567, %v610
    %v616 = vsub.f32 %v568, %v610
    %v617 = vmul.f32 %v613, 1.442695
    %v618 = vpow.pop %v617
    %v619 = vmul.f32 %v614, 1.442695
    %v620 = vpow.pop %v619
    %v621 = vmul.f32 %v615, 1.442695
    %v622 = vpow.pop %v621
    %v623 = vmul.f32 %v616, 1.442695
    %v624 = vpow.pop %v623
    %629 = vset.pattern.permute.xlu0 0
    %630 = vperm.xlu0 %629, %v618
    %v631 = vpop.permute.xlu0 %630
    %632 = vset.pattern.permute.xlu0 0
    %633 = vperm.xlu0 %632, %v620
    %v634 = vpop.permute.xlu0 %633
    %635 = vset.pattern.permute.xlu0 0
    %636 = vperm.xlu0 %635, %v622
    %v637 = vpop.permute.xlu0 %636
    %638 = vset.pattern.permute.xlu0 0
    %639 = vperm.xlu0 %638, %v624
    %v640 = vpop.permute.xlu0 %639
    %v641 = vlaneseq
    %v642 = vshrl.u32 %v641, 7
    %v643 = vsub.s32 %v574, %v642
    %v644 = vrot.slane %v631, %v643
    %v645 = vlaneseq
    %v646 = vshrl.u32 %v645, 7
    %v647 = vsub.s32 %v579, %v646
    %v648 = vrot.slane %v634, %v647
    %v649 = vsel %vm584, %v648, %v644
    %v650 = vlaneseq
    %v651 = vshrl.u32 %v650, 7
    %v652 = vsub.s32 %v574, %v651
    %v653 = vrot.slane %v637, %v652
    %v654 = vlaneseq
    %v655 = vshrl.u32 %v654, 7
    %v656 = vsub.s32 %v579, %v655
    %v657 = vrot.slane %v640, %v656
    %v658 = vsel %vm584, %v657, %v653
    %v659 = vsel %vm595, %v658, %v649
    %v661 = vsel %vm598, %v659, 0.0
    %662 = vadd.xlane.f32.xlu0 %v661
    %v663 = vpop.xlane.xlu0 %662
    %v664 = vrcp.pop %v663
    %v666 = vlaneseq
    %v667 = vshrl.u32 %v666, 7
    %v668 = vsub.s32 0, %v667
    %v669 = vrot.slane %v664, %v668
    %v670 = vlaneseq
    %v671 = vshrl.u32 %v670, 7
    %v672 = vsub.s32 1, %v671
    %v673 = vrot.slane %v664, %v672
    %v676 = vmul.f32 %v618, %v669
    %v677 = vmul.f32 %v620, %v669
    %v678 = vmul.f32 %v622, %v673
    %v679 = vmul.f32 %v624, %v673
    %681 = vset.pattern.permute.xlu0 0
    %682 = vperm.xlu0 %681, %v676
    %v683 = vpop.permute.xlu0 %682
    %686 = vset.pattern.permute.xlu0 0
    %687 = vperm.xlu0 %686, %v677
    %v688 = vpop.permute.xlu0 %687
    %691 = vset.pattern.permute.xlu0 0
    %692 = vperm.xlu0 %691, %v678
    %v693 = vpop.permute.xlu0 %692
    %696 = vset.pattern.permute.xlu0 0
    %697 = vperm.xlu0 %696, %v679
    %v698 = vpop.permute.xlu0 %697
    %v700 = vmul.f32 %v264, %v683
    %v701 = vmul.f32 %v265, %v688
    %v702 = vmul.f32 %v266, %v693
    %v703 = vmul.f32 %v267, %v698
    %v704 = vadd.f32 %v700, %v701
    %v705 = vrot.slane %v704, 4
    %v706 = vadd.f32 %v704, %v705
    %v707 = vrot.slane %v706, 2
    %v708 = vadd.f32 %v706, %v707
    %v709 = vrot.slane %v708, 1
    %v710 = vadd.f32 %v708, %v709
    %v711 = vadd.f32 %v702, %v703
    %v712 = vrot.slane %v711, 4
    %v713 = vadd.f32 %v711, %v712
    %v714 = vrot.slane %v713, 2
    %v715 = vadd.f32 %v713, %v714
    %v716 = vrot.slane %v715, 1
    %v717 = vadd.f32 %v715, %v716
    %v719 = vrot.slane %v392, 1
    %v722 = vadd.f32 %v710, %v392
    %v723 = vadd.f32 %v717, %v719
    %v724 = vpack.c.bf16 %v722, %v722
    %v725 = vpack.c.bf16 %v723, %v723
    %v728 = vunpack.c.l.b16 %v724
    %v729 = vunpack.c.l.b16 %v725
    %v730 = vrot.slane %v729, 7
    %v731 = vsel %vm595, %v730, %v728
    %v732 = vpack.c.b16 %v731, %v731
    %734 = vmatprep.subr.bf16.mxu0 0
    %735 = vmatpush1.bf16.msra.mxu0 %v449
    %736 = vmatprep.subr.bf16.mxu0 0
    %737 = vmatpush1.bf16.msra.mxu0 %v450
    %738 = vmatprep.subr.bf16.mxu0 0
    %739 = vmatpush1.bf16.msra.mxu0 %v451
    %740 = vmatprep.subr.bf16.mxu0 0
    %741 = vmatpush1.bf16.msra.mxu0 %v452
    %742 = vmatprep.subr.bf16.mxu0 0
    %743 = vmatpush1.bf16.msra.mxu0 %v453
    %744 = vmatprep.subr.bf16.mxu0 0
    %745 = vmatpush1.bf16.msra.mxu0 %v454
    %746 = vmatprep.subr.bf16.mxu0 0
    %747 = vmatpush1.bf16.msra.mxu0 %v455
    %748 = vmatprep.subr.bf16.mxu0 0
    %749 = vmatpush1.bf16.msra.mxu0 %v456
    %750 = vmatprep.subr.bf16.mxu0 0
    %751 = vmatpush1.bf16.msra.mxu0 0
    %752 = vmatprep.subr.bf16.mxu0 0
    %753 = vmatpush1.bf16.msra.mxu0 0
    %754 = vmatprep.subr.bf16.mxu0 0
    %755 = vmatpush1.bf16.msra.mxu0 0
    %756 = vmatprep.subr.bf16.mxu0 0
    %757 = vmatpush1.bf16.msra.mxu0 0
    %758 = vmatprep.subr.bf16.mxu0 0
    %759 = vmatpush1.bf16.msra.mxu0 0
    %760 = vmatprep.subr.bf16.mxu0 0
    %761 = vmatpush1.bf16.msra.mxu0 0
    %762 = vmatprep.subr.bf16.mxu0 0
    %763 = vmatpush1.bf16.msra.mxu0 0
    %764 = vmatprep.subr.bf16.mxu0 0
    %765 = vmatpush1.bf16.msra.mxu0 0
    %766 = vmatprep.mubr.bf16.mxu0 0
    %767 = vmatmul.mubr.bf16.gmra.mrb[0].mxu0 %v732
    %v768 = vpop.f32.mrb[0].mxu0
    %v769 = vadd.f32 %v415, %v768
    %v770 = vpop.f32.mrb[0].mxu0
    %v771 = vpop.f32.mrb[0].mxu0
    %v772 = vpop.f32.mrb[0].mxu0
    %773 = vdwg.mxu0
    %v776 = vunpack.c.l.s4 1966171168
    %v777 = vunpack.c.0.s8 %v776
    %v778 = vlaneseq
    %v779 = vshrl.u32 %v778, 7
    %v780 = vsub.s32 %v777, %v779
    %v781 = vrot.slane %v769, %v780
    %v782 = vcombine.high %v781, %v781
    %v784 = vunpack.c.l.s4 1966171168
    %v785 = vunpack.c.0.s8 %v784
    %v786 = vlaneseq
    %v787 = vshrl.u32 %v786, 7
    %v788 = vsub.s32 %v785, %v787
    %v789 = vrot.slane %v781, %v788
    %v791 = vunpack.c.l.s4 1966171168
    %v792 = vunpack.c.0.s8 %v791
    %v793 = vlaneseq
    %v794 = vshrl.u32 %v793, 7
    %v795 = vsub.s32 %v792, %v794
    %v796 = vrot.slane %v782, %v795
    %v797 = vlaneseq
    %v798 = vshrl.u32 %v797, 7
    %v799 = vsub.s32 0, %v798
    %v800 = vrot.slane %v789, %v799
    %v801 = vlaneseq
    %v802 = vshrl.u32 %v801, 7
    %v803 = vsub.s32 0, %v802
    %v804 = vrot.slane %v796, %v803
    %v807 = vadd.f32 %v376, %v800
    %v808 = vadd.f32 %v379, %v800
    %v809 = vadd.f32 %v384, %v804
    %v810 = vadd.f32 %v387, %v804
    %v811 = vtanh.pop %v807
    %v812 = vtanh.pop %v808
    %v813 = vtanh.pop %v809
    %v814 = vtanh.pop %v810
    %v815 = vmul.f32 %v811, %v550
    %v816 = vmul.f32 %v812, %v550
    %v817 = vmul.f32 %v813, %v550
    %v818 = vmul.f32 %v814, %v550
    %819 = vadd.xlane.f32.xlu0 %v815
    %v820 = vpop.xlane.xlu0 %819
    %821 = vadd.xlane.f32.xlu0 %v816
    %v822 = vpop.xlane.xlu0 %821
    %823 = vadd.xlane.f32.xlu0 %v817
    %v824 = vpop.xlane.xlu0 %823
    %825 = vadd.xlane.f32.xlu0 %v818
    %v826 = vpop.xlane.xlu0 %825
    %v827 = vadd.f32 %v820, %v564
    %v828 = vadd.f32 %v822, %v564
    %v829 = vadd.f32 %v824, %v564
    %v830 = vadd.f32 %v826, %v564
    %v835 = vlaneseq
    %v836 = vshrl.u32 %v835, 7
    %v837 = vsub.s32 %v574, %v836
    %v838 = vrot.slane %v827, %v837
    %v839 = vlaneseq
    %v840 = vshrl.u32 %v839, 7
    %v841 = vsub.s32 %v579, %v840
    %v842 = vrot.slane %v828, %v841
    %v843 = vsel %vm584, %v842, %v838
    %v844 = vlaneseq
    %v845 = vshrl.u32 %v844, 7
    %v846 = vsub.s32 %v574, %v845
    %v847 = vrot.slane %v829, %v846
    %v848 = vlaneseq
    %v849 = vshrl.u32 %v848, 7
    %v850 = vsub.s32 %v579, %v849
    %v851 = vrot.slane %v830, %v850
    %v852 = vsel %vm584, %v851, %v847
    %v853 = vsel %vm595, %v852, %v843
    %v855 = vsel %vm598, %v853, -inf
    %856 = vmax.xlane.f32.xlu0 %v855
    %v857 = vpop.xlane.xlu0 %856
    %v859 = vlaneseq
    %v860 = vshrl.u32 %v859, 7
    %v861 = vsub.s32 0, %v860
    %v862 = vrot.slane %v857, %v861
    %v863 = vlaneseq
    %v864 = vshrl.u32 %v863, 7
    %v865 = vsub.s32 1, %v864
    %v866 = vrot.slane %v857, %v865
    %v869 = vsub.f32 %v827, %v862
    %v870 = vsub.f32 %v828, %v862
    %v871 = vsub.f32 %v829, %v866
    %v872 = vsub.f32 %v830, %v866
    %v873 = vmul.f32 %v869, 1.442695
    %v874 = vpow.pop %v873
    %v875 = vmul.f32 %v870, 1.442695
    %v876 = vpow.pop %v875
    %v877 = vmul.f32 %v871, 1.442695
    %v878 = vpow.pop %v877
    %v879 = vmul.f32 %v872, 1.442695
    %v880 = vpow.pop %v879
    %885 = vset.pattern.permute.xlu0 0
    %886 = vperm.xlu0 %885, %v874
    %v887 = vpop.permute.xlu0 %886
    %888 = vset.pattern.permute.xlu0 0
    %889 = vperm.xlu0 %888, %v876
    %v890 = vpop.permute.xlu0 %889
    %891 = vset.pattern.permute.xlu0 0
    %892 = vperm.xlu0 %891, %v878
    %v893 = vpop.permute.xlu0 %892
    %894 = vset.pattern.permute.xlu0 0
    %895 = vperm.xlu0 %894, %v880
    %v896 = vpop.permute.xlu0 %895
    %v897 = vlaneseq
    %v898 = vshrl.u32 %v897, 7
    %v899 = vsub.s32 %v574, %v898
    %v900 = vrot.slane %v887, %v899
    %v901 = vlaneseq
    %v902 = vshrl.u32 %v901, 7
    %v903 = vsub.s32 %v579, %v902
    %v904 = vrot.slane %v890, %v903
    %v905 = vsel %vm584, %v904, %v900
    %v906 = vlaneseq
    %v907 = vshrl.u32 %v906, 7
    %v908 = vsub.s32 %v574, %v907
    %v909 = vrot.slane %v893, %v908
    %v910 = vlaneseq
    %v911 = vshrl.u32 %v910, 7
    %v912 = vsub.s32 %v579, %v911
    %v913 = vrot.slane %v896, %v912
    %v914 = vsel %vm584, %v913, %v909
    %v915 = vsel %vm595, %v914, %v905
    %v917 = vsel %vm598, %v915, 0.0
    %918 = vadd.xlane.f32.xlu0 %v917
    %v919 = vpop.xlane.xlu0 %918
    %v920 = vrcp.pop %v919
    %v922 = vlaneseq
    %v923 = vshrl.u32 %v922, 7
    %v924 = vsub.s32 0, %v923
    %v925 = vrot.slane %v920, %v924
    %v926 = vlaneseq
    %v927 = vshrl.u32 %v926, 7
    %v928 = vsub.s32 1, %v927
    %v929 = vrot.slane %v920, %v928
    %v932 = vmul.f32 %v874, %v925
    %v933 = vmul.f32 %v876, %v925
    %v934 = vmul.f32 %v878, %v929
    %v935 = vmul.f32 %v880, %v929
    %937 = vset.pattern.permute.xlu0 0
    %938 = vperm.xlu0 %937, %v932
    %v939 = vpop.permute.xlu0 %938
    %942 = vset.pattern.permute.xlu0 0
    %943 = vperm.xlu0 %942, %v933
    %v944 = vpop.permute.xlu0 %943
    %947 = vset.pattern.permute.xlu0 0
    %948 = vperm.xlu0 %947, %v934
    %v949 = vpop.permute.xlu0 %948
    %952 = vset.pattern.permute.xlu0 0
    %953 = vperm.xlu0 %952, %v935
    %v954 = vpop.permute.xlu0 %953
    %v956 = vmul.f32 %v264, %v939
    %v957 = vmul.f32 %v265, %v944
    %v958 = vmul.f32 %v266, %v949
    %v959 = vmul.f32 %v267, %v954
    %v960 = vadd.f32 %v956, %v957
    %v961 = vrot.slane %v960, 4
    %v962 = vadd.f32 %v960, %v961
    %v963 = vrot.slane %v962, 2
    %v964 = vadd.f32 %v962, %v963
    %v965 = vrot.slane %v964, 1
    %v966 = vadd.f32 %v964, %v965
    %v967 = vadd.f32 %v958, %v959
    %v968 = vrot.slane %v967, 4
    %v969 = vadd.f32 %v967, %v968
    %v970 = vrot.slane %v969, 2
    %v971 = vadd.f32 %v969, %v970
    %v972 = vrot.slane %v971, 1
    %v973 = vadd.f32 %v971, %v972
    %v974 = vadd.f32 %v966, %v722
    %v975 = vadd.f32 %v973, %v723
    %v978 = vrot.slane %v975, 7
    %v979 = vsel %vm595, %v978, %v974
    %981 = vst [vmem:[%s10] sm:$0x3] %v979
    // Predicated region
    $region74: #{vqa_forward.2} parent=1 // pred_check
      _
    $region75: #{vqa_forward.2} parent=1 // pred_check_branch
      %983 = sbr.rel (0) target = $region77
    $region76: #{vqa_forward.2} parent=1 // pred_region
      _
    $region77: #{vqa_forward.2} parent=1 // pred_fallthru
      _
    // Predicated region
    $region78: #{vqa_forward.2} parent=1 // pred_check
      _
    $region79: #{vqa_forward.2} parent=1 // pred_check_branch
      %985 = sbr.rel (0) target = $region81
    $region80: #{vqa_forward.2} parent=1 // pred_region
      _
    $region81: #{vqa_forward.2} parent=1 // pred_fallthru
      _
    %986 = vsyncpa [#allocation4], 1
    %987 = vsyncpa [#allocation6], 1
    %988 = vsyncpa [#allocation9], 1
    %989 = vsyncpa [#allocation12], 1
    %990 = vsyncpa [#allocation15], 1

</llo_original>
